<compile_context>
chip_gen: v5e
topology: v5e:2x2
jax: 0.10.0
libtpu: 0.0.40
codegen_flags: <defaults>
</compile_context>

<pallas_src>
import functools

import jax
import jax.numpy as jnp
from jax import lax
from jax.experimental import pallas as pl
from jax.experimental.pallas import tpu as pltpu

_LANES = 128
_SUBLANES = 8


def _round_up(n, m):
    return ((n + m - 1) // m) * m


def _lstm_recurrent_kernel(gx_ref, whh_hbm, out_ref, whh_vmem, h_sc, c_sc,
                           dma_sem, *, unroll):
    """One grid step = t_chunk time steps of the LSTM recurrence.

    gx_ref  : (t_chunk, B_pad, 4*H_pad) bf16  precomputed x@W_ih^T + bias chunk
    whh_hbm : (H_pad, 4*H_pad) bf16           W_hh^T, raw HBM ref (pl.ANY)
    out_ref : (t_chunk, B_pad, H_pad) f32     hidden states (time-major)
    whh_vmem: (H_pad, 4*H_pad) bf16 scratch   resident single-buffered W_hh^T
    h_sc/c_sc: (B_pad, H_pad) f32 scratch     persistent h / c state
    dma_sem : scalar DMA semaphore
    """
    @pl.when(pl.program_id(0) == 0)
    def _init():
        # Copy W_hh^T into VMEM exactly once; it stays resident for all chunks.
        cp = pltpu.make_async_copy(whh_hbm, whh_vmem, dma_sem)
        cp.start()
        h_sc[...] = jnp.zeros_like(h_sc)
        c_sc[...] = jnp.zeros_like(c_sc)
        cp.wait()

    hp = h_sc.shape[-1]  # H_pad: every gate slab is lane-aligned (multiple of 128)

    def step(t, carry):
        h_prev, c_prev = carry  # (B_pad, H_pad) f32, kept in vregs
        # RHS is streamed from VMEM inside the step (not hoisted before the
        # unrolled loop) so register pressure stays bounded at large H.
        gates = gx_ref[t].astype(jnp.float32) + jnp.dot(
            h_prev.astype(jnp.bfloat16), whh_vmem[...],
            preferred_element_type=jnp.float32)           # (B_pad, 4*H_pad) f32

        # PyTorch gate order [i, f, g, o]; gate-major padded layout means each
        # slab starts at a multiple of H_pad (=128k) -> full-vreg VPU/EUP math.
        i_g = jax.nn.sigmoid(gates[:, 0 * hp:1 * hp])
        f_g = jax.nn.sigmoid(gates[:, 1 * hp:2 * hp])
        g_g = jnp.tanh(gates[:, 2 * hp:3 * hp])
        o_g = jax.nn.sigmoid(gates[:, 3 * hp:4 * hp])

        c_new = f_g * c_prev + i_g * g_g
        h_new = o_g * jnp.tanh(c_new)
        out_ref[t] = h_new.astype(out_ref.dtype)          # full (8,128)-vreg store
        return h_new, c_new

    h_fin, c_fin = lax.fori_loop(0, out_ref.shape[0], step,
                                 (h_sc[...], c_sc[...]), unroll=unroll)

    # Persist state once per chunk.  NOTE: padded tail time steps (t >= T) still
    # advance h/c; the returned sequence is unaffected (rows >= T are sliced
    # off) and the module only returns the sequence, so this is fine — but the
    # scratch state is NOT a valid (h_n, c_n) if that were ever needed.
    h_sc[...] = h_fin
    c_sc[...] = c_fin


def temporal_lstm_forward(x, w_ih, w_hh, b_ih, b_hh, *, t_chunk=32):
    """Equivalent of TemporalLSTM.forward (num_layers=1, unidirectional).

    x    : (B, T, D) float32
    w_ih : (4H, D), w_hh: (4H, H), b_ih/b_hh: (4H,)  -- PyTorch LSTM layout
    returns (B, T, H) float32
    """
    B, T, D = x.shape
    H = w_hh.shape[1]

    H_pad = _round_up(H, _LANES)
    G_pad = 4 * H_pad
    B_pad = _round_up(B, _SUBLANES)

    # ---- Gate-major, lane-padded parameters (PyTorch row order [i, f, g, o]).
    def _pad_gate_rows(w):
        # (4H, ...) -> (4*H_pad, ...): each gate's H rows padded to H_pad rows.
        w4 = w.reshape((4, H) + w.shape[1:])
        pad = ((0, 0), (0, H_pad - H)) + ((0, 0),) * (w.ndim - 1)
        return jnp.pad(w4, pad).reshape((4 * H_pad,) + w.shape[1:])

    wih_t = jnp.transpose(_pad_gate_rows(w_ih)).astype(jnp.bfloat16)   # (D, 4H_pad)
    whh_t = jnp.transpose(_pad_gate_rows(w_hh)).astype(jnp.bfloat16)   # (H, 4H_pad)
    whh_t = jnp.pad(whh_t, ((0, H_pad - H), (0, 0)))                   # (H_pad, 4H_pad)
    bias = _pad_gate_rows(b_ih + b_hh).astype(jnp.float32)             # (4H_pad,)

    # ---- Hoisted input projection, computed directly time-major & batch-padded
    #      (transposing x is ~4H/D times cheaper than transposing gx afterwards).
    x_tm = jnp.transpose(x, (1, 0, 2)).astype(jnp.float32)             # (T, B, D)
    if B_pad != B:
        x_tm = jnp.pad(x_tm, ((0, 0), (0, B_pad - B), (0, 0)))
    gx = jnp.dot(x_tm.reshape(T * B_pad, D).astype(jnp.bfloat16), wih_t,
                 preferred_element_type=jnp.float32) + bias            # f32
    gx_tm = gx.reshape(T, B_pad, G_pad).astype(jnp.bfloat16)           # bf16 stream

    # ---- Time chunking (unroll capped at 8; chunk kept a multiple of 8).
    t_chunk = max(1, min(int(t_chunk), T))
    if t_chunk > _SUBLANES:
        t_chunk = (t_chunk // _SUBLANES) * _SUBLANES
    unroll = t_chunk if t_chunk <= _SUBLANES else _SUBLANES
    n_chunks = pl.cdiv(T, t_chunk)
    Tp = n_chunks * t_chunk
    if Tp != T:
        gx_tm = jnp.pad(gx_tm, ((0, Tp - T), (0, 0), (0, 0)))

    # ---- Explicit VMEM budget: resident W_hh^T + double-buffered gx/out blocks
    #      + state, plus headroom (kept well under v7x's 64 MiB physical VMEM
    #      for the shapes this wrapper is expected to see).
    gx_blk = t_chunk * B_pad * G_pad * 2        # bf16
    out_blk = t_chunk * B_pad * H_pad * 4       # f32
    whh_bytes = H_pad * G_pad * 2               # bf16, single-buffered
    state_bytes = 2 * B_pad * H_pad * 4
    vmem_limit = int(min(whh_bytes + 2 * (gx_blk + out_blk) + state_bytes
                         + (4 << 20), 100 << 20))

    kernel = functools.partial(_lstm_recurrent_kernel, unroll=unroll)

    out_tm = pl.pallas_call(
        kernel,
        out_shape=jax.ShapeDtypeStruct((Tp, B_pad, H_pad), jnp.float32),
        grid_spec=pltpu.PrefetchScalarGridSpec(
            num_scalar_prefetch=0,
            grid=(n_chunks,),
            in_specs=[
                pl.BlockSpec((t_chunk, B_pad, G_pad), lambda c: (c, 0, 0)),
                pl.BlockSpec(memory_space=pl.ANY),      # W_hh^T stays in HBM
            ],
            out_specs=pl.BlockSpec((t_chunk, B_pad, H_pad), lambda c: (c, 0, 0)),
            scratch_shapes=[
                pltpu.VMEM((H_pad, G_pad), jnp.bfloat16),   # resident W_hh^T
                pltpu.VMEM((B_pad, H_pad), jnp.float32),    # h state
                pltpu.VMEM((B_pad, H_pad), jnp.float32),    # c state
                pltpu.SemaphoreType.DMA(()),                # weight-copy semaphore
            ],
        ),
        compiler_params=pltpu.CompilerParams(
            dimension_semantics=("arbitrary",),   # sequential recurrence over time
            vmem_limit_bytes=vmem_limit,
        ),
    )(gx_tm, whh_t)

    # Slice padding off first so the wrapper-side transpose only touches the
    # unpadded (T, B, H) tensor.
    return jnp.transpose(out_tm[:T, :B, :H], (1, 0, 2))   # (B, T, H)


def _reference_lstm(x, w_ih, w_hh, b_ih, b_hh):
    """Pure-JAX f32 reference (lax.scan) mirroring torch.nn.LSTM semantics."""
    B, T, D = x.shape
    H = w_hh.shape[1]
    bias = b_ih + b_hh

    def step(carry, x_t):
        h, c = carry
        gates = x_t @ w_ih.T + h @ w_hh.T + bias
        i = jax.nn.sigmoid(gates[:, 0 * H:1 * H])
        f = jax.nn.sigmoid(gates[:, 1 * H:2 * H])
        g = jnp.tanh(gates[:, 2 * H:3 * H])
        o = jax.nn.sigmoid(gates[:, 3 * H:4 * H])
        c = f * c + i * g
        h = o * jnp.tanh(c)
        return (h, c), h

    h0 = jnp.zeros((B, H), jnp.float32)
    c0 = jnp.zeros((B, H), jnp.float32)
    _, hs = lax.scan(step, (h0, c0), jnp.transpose(x, (1, 0, 2)))
    return jnp.transpose(hs, (1, 0, 2))


if __name__ == "__main__":
    # (B, T, input_dim) -> (B, T, hidden_dim)
    B, T, D, H = 2, 8, 4, 32

    key = jax.random.PRNGKey(0)
    kx, k1, k2, k3, k4 = jax.random.split(key, 5)

    x = jax.random.normal(kx, (B, T, D), dtype=jnp.float32)

    # Deterministic parameter init mimicking PyTorch uniform(-1/sqrt(H), 1/sqrt(H)).
    bound = 1.0 / jnp.sqrt(jnp.float32(H))
    w_ih = jax.random.uniform(k1, (4 * H, D), jnp.float32, -bound, bound)
    w_hh = jax.random.uniform(k2, (4 * H, H), jnp.float32, -bound, bound)
    b_ih = jax.random.uniform(k3, (4 * H,), jnp.float32, -bound, bound)
    b_hh = jax.random.uniform(k4, (4 * H,), jnp.float32, -bound, bound)

    fwd = jax.jit(temporal_lstm_forward)
    out = jax.block_until_ready(fwd(x, w_ih, w_hh, b_ih, b_hh))

    ref = _reference_lstm(x, w_ih, w_hh, b_ih, b_hh)
    assert out.shape == (B, T, H), out.shape
    # bf16 matmuls / bf16 gx stream (f32 accumulation & state) vs. f32 reference
    # -> relaxed tolerance; observed error at these shapes is ~1e-3.
    max_err = float(jnp.abs(out - ref).max())
    assert max_err < 3e-2, max_err

    print("KERNEL_OK")
</pallas_src>

<mosaic_0001>
module attributes {stable_mosaic.version = 11 : i64} {
  func.func @_lstm_recurrent_kernel(%arg0: i32, %arg1: memref<8x8x512xbf16, #tpu.memory_space<vmem>>, %arg2: memref<128x512xbf16, #tpu.memory_space<any>>, %arg3: memref<8x8x128xf32, #tpu.memory_space<vmem>>, %arg4: memref<128x512xbf16, #tpu.memory_space<vmem>>, %arg5: memref<8x128xf32, #tpu.memory_space<vmem>>, %arg6: memref<8x128xf32, #tpu.memory_space<vmem>>, %arg7: memref<!tpu.dma_semaphore, #tpu.memory_space<semaphore_mem>>) attributes {dimension_semantics = [#tpu.dimension_semantics<arbitrary>], iteration_bounds = array<i64: 1>, scalar_prefetch = 0 : i64, scratch_operands = 4 : i64, tpu.core_type = #tpu.core_type<tc>, window_params = [{transform_indices = @transform_0, window_bounds = array<i64: 8, 8, 512>}, {}, {transform_indices = @transform_2, window_bounds = array<i64: 8, 8, 128>}]} {
    %c0_i32 = arith.constant 0 : i32
    %0 = arith.cmpi eq, %arg0, %c0_i32 : i32
    %1 = arith.extui %0 : i1 to i32
    %c0_i32_0 = arith.constant 0 : i32
    %2 = arith.cmpi ne, %1, %c0_i32_0 : i32
    scf.if %2 {
      tpu.enqueue_dma source(%arg2 : memref<128x512xbf16, #tpu.memory_space<any>>) target(%arg4 : memref<128x512xbf16, #tpu.memory_space<vmem>>) target_semaphore(%arg7 : memref<!tpu.dma_semaphore, #tpu.memory_space<semaphore_mem>>)
      %cst_88 = arith.constant 0.000000e+00 : f32
      %303 = vector.broadcast %cst_88 : f32 to vector<8x128xf32>
      %c0_89 = arith.constant 0 : index
      %c0_90 = arith.constant 0 : index
      %304 = vector.load %arg5[%c0_89, %c0_90] : memref<8x128xf32, #tpu.memory_space<vmem>>, vector<8x128xf32>
      tpu.vector_store %arg5[%c0_89, %c0_90], %303 {strides = array<i32>} : memref<8x128xf32, #tpu.memory_space<vmem>>, vector<8x128xf32>,
      %cst_91 = arith.constant 0.000000e+00 : f32
      %305 = vector.broadcast %cst_91 : f32 to vector<8x128xf32>
      %c0_92 = arith.constant 0 : index
      %c0_93 = arith.constant 0 : index
      %306 = vector.load %arg6[%c0_92, %c0_93] : memref<8x128xf32, #tpu.memory_space<vmem>>, vector<8x128xf32>
      tpu.vector_store %arg6[%c0_92, %c0_93], %305 {strides = array<i32>} : memref<8x128xf32, #tpu.memory_space<vmem>>, vector<8x128xf32>,
      tpu.wait_dma2 semaphore(%arg7 : memref<!tpu.dma_semaphore, #tpu.memory_space<semaphore_mem>>) src(%arg2 : memref<128x512xbf16, #tpu.memory_space<any>>) dst(%arg4 : memref<128x512xbf16, #tpu.memory_space<vmem>>)
    } else {
    }
    %c0 = arith.constant 0 : index
    %c0_1 = arith.constant 0 : index
    %3 = vector.load %arg5[%c0, %c0_1] : memref<8x128xf32, #tpu.memory_space<vmem>>, vector<8x128xf32>
    %c0_2 = arith.constant 0 : index
    %c0_3 = arith.constant 0 : index
    %4 = vector.load %arg6[%c0_2, %c0_3] : memref<8x128xf32, #tpu.memory_space<vmem>>, vector<8x128xf32>
    %c0_i32_4 = arith.constant 0 : i32
    %5 = arith.index_cast %c0_i32_4 : i32 to index
    %c0_5 = arith.constant 0 : index
    %c0_6 = arith.constant 0 : index
    %6 = vector.load %arg1[%5, %c0_5, %c0_6] : memref<8x8x512xbf16, #tpu.memory_space<vmem>>, vector<1x8x512xbf16>
    %7 = vector.shape_cast %6 : vector<1x8x512xbf16> to vector<8x512xbf16>
    %8 = arith.extf %7 : vector<8x512xbf16> to vector<8x512xf32>
    %9 = arith.truncf %3 : vector<8x128xf32> to vector<8x128xbf16>
    %c0_7 = arith.constant 0 : index
    %c0_8 = arith.constant 0 : index
    %10 = vector.load %arg4[%c0_7, %c0_8] : memref<128x512xbf16, #tpu.memory_space<vmem>>, vector<128x512xbf16>
    %cst = arith.constant dense<0.000000e+00> : vector<8x512xf32>
    %11 = tpu.matmul %9, %10, %cst {dimension_numbers = #tpu.dot_dimension_numbers<[1], [0], [0], [1], [0, 0, 1, 1], [], []>} : vector<8x128xbf16>, vector<128x512xbf16>, vector<8x512xf32> -> vector<8x512xf32>
    %12 = arith.addf %8, %11 : vector<8x512xf32>
    %13 = vector.extract_strided_slice %12 {offsets = [0, 0], sizes = [8, 128], strides = [1, 1]} : vector<8x512xf32> to vector<8x128xf32>
    %14 = arith.negf %13 : vector<8x128xf32>
    %15 = math.exp %14 : vector<8x128xf32>
    %cst_9 = arith.constant 1.000000e+00 : f32
    %16 = vector.broadcast %cst_9 : f32 to vector<8x128xf32>
    %17 = arith.addf %16, %15 : vector<8x128xf32>
    %18 = arith.divf %16, %17 : vector<8x128xf32>
    %19 = vector.extract_strided_slice %12 {offsets = [0, 128], sizes = [8, 128], strides = [1, 1]} : vector<8x512xf32> to vector<8x128xf32>
    %20 = arith.negf %19 : vector<8x128xf32>
    %21 = math.exp %20 : vector<8x128xf32>
    %cst_10 = arith.constant 1.000000e+00 : f32
    %22 = vector.broadcast %cst_10 : f32 to vector<8x128xf32>
    %23 = arith.addf %22, %21 : vector<8x128xf32>
    %24 = arith.divf %22, %23 : vector<8x128xf32>
    %25 = vector.extract_strided_slice %12 {offsets = [0, 256], sizes = [8, 128], strides = [1, 1]} : vector<8x512xf32> to vector<8x128xf32>
    %26 = math.tanh %25 : vector<8x128xf32>
    %27 = vector.extract_strided_slice %12 {offsets = [0, 384], sizes = [8, 128], strides = [1, 1]} : vector<8x512xf32> to vector<8x128xf32>
    %28 = arith.negf %27 : vector<8x128xf32>
    %29 = math.exp %28 : vector<8x128xf32>
    %cst_11 = arith.constant 1.000000e+00 : f32
    %30 = vector.broadcast %cst_11 : f32 to vector<8x128xf32>
    %31 = arith.addf %30, %29 : vector<8x128xf32>
    %32 = arith.divf %30, %31 : vector<8x128xf32>
    %33 = arith.mulf %24, %4 : vector<8x128xf32>
    %34 = arith.mulf %18, %26 : vector<8x128xf32>
    %35 = arith.addf %33, %34 : vector<8x128xf32>
    %36 = math.tanh %35 : vector<8x128xf32>
    %37 = arith.mulf %32, %36 : vector<8x128xf32>
    %38 = arith.index_cast %c0_i32_4 : i32 to index
    %c0_12 = arith.constant 0 : index
    %c0_13 = arith.constant 0 : index
    %39 = vector.load %arg3[%38, %c0_12, %c0_13] : memref<8x8x128xf32, #tpu.memory_space<vmem>>, vector<1x8x128xf32>
    %40 = vector.shape_cast %39 : vector<1x8x128xf32> to vector<8x128xf32>
    %41 = vector.shape_cast %37 : vector<8x128xf32> to vector<1x8x128xf32>
    tpu.vector_store %arg3[%38, %c0_12, %c0_13], %41 {strides = array<i32>} : memref<8x8x128xf32, #tpu.memory_space<vmem>>, vector<1x8x128xf32>,
    %c1_i32 = arith.constant 1 : i32
    %42 = arith.index_cast %c1_i32 : i32 to index
    %c0_14 = arith.constant 0 : index
    %c0_15 = arith.constant 0 : index
    %43 = vector.load %arg1[%42, %c0_14, %c0_15] : memref<8x8x512xbf16, #tpu.memory_space<vmem>>, vector<1x8x512xbf16>
    %44 = vector.shape_cast %43 : vector<1x8x512xbf16> to vector<8x512xbf16>
    %45 = arith.extf %44 : vector<8x512xbf16> to vector<8x512xf32>
    %46 = arith.truncf %37 : vector<8x128xf32> to vector<8x128xbf16>
    %c0_16 = arith.constant 0 : index
    %c0_17 = arith.constant 0 : index
    %47 = vector.load %arg4[%c0_16, %c0_17] : memref<128x512xbf16, #tpu.memory_space<vmem>>, vector<128x512xbf16>
    %cst_18 = arith.constant dense<0.000000e+00> : vector<8x512xf32>
    %48 = tpu.matmul %46, %47, %cst_18 {dimension_numbers = #tpu.dot_dimension_numbers<[1], [0], [0], [1], [0, 0, 1, 1], [], []>} : vector<8x128xbf16>, vector<128x512xbf16>, vector<8x512xf32> -> vector<8x512xf32>
    %49 = arith.addf %45, %48 : vector<8x512xf32>
    %50 = vector.extract_strided_slice %49 {offsets = [0, 0], sizes = [8, 128], strides = [1, 1]} : vector<8x512xf32> to vector<8x128xf32>
    %51 = arith.negf %50 : vector<8x128xf32>
    %52 = math.exp %51 : vector<8x128xf32>
    %cst_19 = arith.constant 1.000000e+00 : f32
    %53 = vector.broadcast %cst_19 : f32 to vector<8x128xf32>
    %54 = arith.addf %53, %52 : vector<8x128xf32>
    %55 = arith.divf %53, %54 : vector<8x128xf32>
    %56 = vector.extract_strided_slice %49 {offsets = [0, 128], sizes = [8, 128], strides = [1, 1]} : vector<8x512xf32> to vector<8x128xf32>
    %57 = arith.negf %56 : vector<8x128xf32>
    %58 = math.exp %57 : vector<8x128xf32>
    %cst_20 = arith.constant 1.000000e+00 : f32
    %59 = vector.broadcast %cst_20 : f32 to vector<8x128xf32>
    %60 = arith.addf %59, %58 : vector<8x128xf32>
    %61 = arith.divf %59, %60 : vector<8x128xf32>
    %62 = vector.extract_strided_slice %49 {offsets = [0, 256], sizes = [8, 128], strides = [1, 1]} : vector<8x512xf32> to vector<8x128xf32>
    %63 = math.tanh %62 : vector<8x128xf32>
    %64 = vector.extract_strided_slice %49 {offsets = [0, 384], sizes = [8, 128], strides = [1, 1]} : vector<8x512xf32> to vector<8x128xf32>
    %65 = arith.negf %64 : vector<8x128xf32>
    %66 = math.exp %65 : vector<8x128xf32>
    %cst_21 = arith.constant 1.000000e+00 : f32
    %67 = vector.broadcast %cst_21 : f32 to vector<8x128xf32>
    %68 = arith.addf %67, %66 : vector<8x128xf32>
    %69 = arith.divf %67, %68 : vector<8x128xf32>
    %70 = arith.mulf %61, %35 : vector<8x128xf32>
    %71 = arith.mulf %55, %63 : vector<8x128xf32>
    %72 = arith.addf %70, %71 : vector<8x128xf32>
    %73 = math.tanh %72 : vector<8x128xf32>
    %74 = arith.mulf %69, %73 : vector<8x128xf32>
    %75 = arith.index_cast %c1_i32 : i32 to index
    %c0_22 = arith.constant 0 : index
    %c0_23 = arith.constant 0 : index
    %76 = vector.load %arg3[%75, %c0_22, %c0_23] : memref<8x8x128xf32, #tpu.memory_space<vmem>>, vector<1x8x128xf32>
    %77 = vector.shape_cast %76 : vector<1x8x128xf32> to vector<8x128xf32>
    %78 = vector.shape_cast %74 : vector<8x128xf32> to vector<1x8x128xf32>
    tpu.vector_store %arg3[%75, %c0_22, %c0_23], %78 {strides = array<i32>} : memref<8x8x128xf32, #tpu.memory_space<vmem>>, vector<1x8x128xf32>,
    %c2_i32 = arith.constant 2 : i32
    %79 = arith.index_cast %c2_i32 : i32 to index
    %c0_24 = arith.constant 0 : index
    %c0_25 = arith.constant 0 : index
    %80 = vector.load %arg1[%79, %c0_24, %c0_25] : memref<8x8x512xbf16, #tpu.memory_space<vmem>>, vector<1x8x512xbf16>
    %81 = vector.shape_cast %80 : vector<1x8x512xbf16> to vector<8x512xbf16>
    %82 = arith.extf %81 : vector<8x512xbf16> to vector<8x512xf32>
    %83 = arith.truncf %74 : vector<8x128xf32> to vector<8x128xbf16>
    %c0_26 = arith.constant 0 : index
    %c0_27 = arith.constant 0 : index
    %84 = vector.load %arg4[%c0_26, %c0_27] : memref<128x512xbf16, #tpu.memory_space<vmem>>, vector<128x512xbf16>
    %cst_28 = arith.constant dense<0.000000e+00> : vector<8x512xf32>
    %85 = tpu.matmul %83, %84, %cst_28 {dimension_numbers = #tpu.dot_dimension_numbers<[1], [0], [0], [1], [0, 0, 1, 1], [], []>} : vector<8x128xbf16>, vector<128x512xbf16>, vector<8x512xf32> -> vector<8x512xf32>
    %86 = arith.addf %82, %85 : vector<8x512xf32>
    %87 = vector.extract_strided_slice %86 {offsets = [0, 0], sizes = [8, 128], strides = [1, 1]} : vector<8x512xf32> to vector<8x128xf32>
    %88 = arith.negf %87 : vector<8x128xf32>
    %89 = math.exp %88 : vector<8x128xf32>
    %cst_29 = arith.constant 1.000000e+00 : f32
    %90 = vector.broadcast %cst_29 : f32 to vector<8x128xf32>
    %91 = arith.addf %90, %89 : vector<8x128xf32>
    %92 = arith.divf %90, %91 : vector<8x128xf32>
    %93 = vector.extract_strided_slice %86 {offsets = [0, 128], sizes = [8, 128], strides = [1, 1]} : vector<8x512xf32> to vector<8x128xf32>
    %94 = arith.negf %93 : vector<8x128xf32>
    %95 = math.exp %94 : vector<8x128xf32>
    %cst_30 = arith.constant 1.000000e+00 : f32
    %96 = vector.broadcast %cst_30 : f32 to vector<8x128xf32>
    %97 = arith.addf %96, %95 : vector<8x128xf32>
    %98 = arith.divf %96, %97 : vector<8x128xf32>
    %99 = vector.extract_strided_slice %86 {offsets = [0, 256], sizes = [8, 128], strides = [1, 1]} : vector<8x512xf32> to vector<8x128xf32>
    %100 = math.tanh %99 : vector<8x128xf32>
    %101 = vector.extract_strided_slice %86 {offsets = [0, 384], sizes = [8, 128], strides = [1, 1]} : vector<8x512xf32> to vector<8x128xf32>
    %102 = arith.negf %101 : vector<8x128xf32>
    %103 = math.exp %102 : vector<8x128xf32>
    %cst_31 = arith.constant 1.000000e+00 : f32
    %104 = vector.broadcast %cst_31 : f32 to vector<8x128xf32>
    %105 = arith.addf %104, %103 : vector<8x128xf32>
    %106 = arith.divf %104, %105 : vector<8x128xf32>
    %107 = arith.mulf %98, %72 : vector<8x128xf32>
    %108 = arith.mulf %92, %100 : vector<8x128xf32>
    %109 = arith.addf %107, %108 : vector<8x128xf32>
    %110 = math.tanh %109 : vector<8x128xf32>
    %111 = arith.mulf %106, %110 : vector<8x128xf32>
    %112 = arith.index_cast %c2_i32 : i32 to index
    %c0_32 = arith.constant 0 : index
    %c0_33 = arith.constant 0 : index
    %113 = vector.load %arg3[%112, %c0_32, %c0_33] : memref<8x8x128xf32, #tpu.memory_space<vmem>>, vector<1x8x128xf32>
    %114 = vector.shape_cast %113 : vector<1x8x128xf32> to vector<8x128xf32>
    %115 = vector.shape_cast %111 : vector<8x128xf32> to vector<1x8x128xf32>
    tpu.vector_store %arg3[%112, %c0_32, %c0_33], %115 {strides = array<i32>} : memref<8x8x128xf32, #tpu.memory_space<vmem>>, vector<1x8x128xf32>,
    %c3_i32 = arith.constant 3 : i32
    %116 = arith.index_cast %c3_i32 : i32 to index
    %c0_34 = arith.constant 0 : index
    %c0_35 = arith.constant 0 : index
    %117 = vector.load %arg1[%116, %c0_34, %c0_35] : memref<8x8x512xbf16, #tpu.memory_space<vmem>>, vector<1x8x512xbf16>
    %118 = vector.shape_cast %117 : vector<1x8x512xbf16> to vector<8x512xbf16>
    %119 = arith.extf %118 : vector<8x512xbf16> to vector<8x512xf32>
    %120 = arith.truncf %111 : vector<8x128xf32> to vector<8x128xbf16>
    %c0_36 = arith.constant 0 : index
    %c0_37 = arith.constant 0 : index
    %121 = vector.load %arg4[%c0_36, %c0_37] : memref<128x512xbf16, #tpu.memory_space<vmem>>, vector<128x512xbf16>
    %cst_38 = arith.constant dense<0.000000e+00> : vector<8x512xf32>
    %122 = tpu.matmul %120, %121, %cst_38 {dimension_numbers = #tpu.dot_dimension_numbers<[1], [0], [0], [1], [0, 0, 1, 1], [], []>} : vector<8x128xbf16>, vector<128x512xbf16>, vector<8x512xf32> -> vector<8x512xf32>
    %123 = arith.addf %119, %122 : vector<8x512xf32>
    %124 = vector.extract_strided_slice %123 {offsets = [0, 0], sizes = [8, 128], strides = [1, 1]} : vector<8x512xf32> to vector<8x128xf32>
    %125 = arith.negf %124 : vector<8x128xf32>
    %126 = math.exp %125 : vector<8x128xf32>
    %cst_39 = arith.constant 1.000000e+00 : f32
    %127 = vector.broadcast %cst_39 : f32 to vector<8x128xf32>
    %128 = arith.addf %127, %126 : vector<8x128xf32>
    %129 = arith.divf %127, %128 : vector<8x128xf32>
    %130 = vector.extract_strided_slice %123 {offsets = [0, 128], sizes = [8, 128], strides = [1, 1]} : vector<8x512xf32> to vector<8x128xf32>
    %131 = arith.negf %130 : vector<8x128xf32>
    %132 = math.exp %131 : vector<8x128xf32>
    %cst_40 = arith.constant 1.000000e+00 : f32
    %133 = vector.broadcast %cst_40 : f32 to vector<8x128xf32>
    %134 = arith.addf %133, %132 : vector<8x128xf32>
    %135 = arith.divf %133, %134 : vector<8x128xf32>
    %136 = vector.extract_strided_slice %123 {offsets = [0, 256], sizes = [8, 128], strides = [1, 1]} : vector<8x512xf32> to vector<8x128xf32>
    %137 = math.tanh %136 : vector<8x128xf32>
    %138 = vector.extract_strided_slice %123 {offsets = [0, 384], sizes = [8, 128], strides = [1, 1]} : vector<8x512xf32> to vector<8x128xf32>
    %139 = arith.negf %138 : vector<8x128xf32>
    %140 = math.exp %139 : vector<8x128xf32>
    %cst_41 = arith.constant 1.000000e+00 : f32
    %141 = vector.broadcast %cst_41 : f32 to vector<8x128xf32>
    %142 = arith.addf %141, %140 : vector<8x128xf32>
    %143 = arith.divf %141, %142 : vector<8x128xf32>
    %144 = arith.mulf %135, %109 : vector<8x128xf32>
    %145 = arith.mulf %129, %137 : vector<8x128xf32>
    %146 = arith.addf %144, %145 : vector<8x128xf32>
    %147 = math.tanh %146 : vector<8x128xf32>
    %148 = arith.mulf %143, %147 : vector<8x128xf32>
    %149 = arith.index_cast %c3_i32 : i32 to index
    %c0_42 = arith.constant 0 : index
    %c0_43 = arith.constant 0 : index
    %150 = vector.load %arg3[%149, %c0_42, %c0_43] : memref<8x8x128xf32, #tpu.memory_space<vmem>>, vector<1x8x128xf32>
    %151 = vector.shape_cast %150 : vector<1x8x128xf32> to vector<8x128xf32>
    %152 = vector.shape_cast %148 : vector<8x128xf32> to vector<1x8x128xf32>
    tpu.vector_store %arg3[%149, %c0_42, %c0_43], %152 {strides = array<i32>} : memref<8x8x128xf32, #tpu.memory_space<vmem>>, vector<1x8x128xf32>,
    %c4_i32 = arith.constant 4 : i32
    %153 = arith.index_cast %c4_i32 : i32 to index
    %c0_44 = arith.constant 0 : index
    %c0_45 = arith.constant 0 : index
    %154 = vector.load %arg1[%153, %c0_44, %c0_45] : memref<8x8x512xbf16, #tpu.memory_space<vmem>>, vector<1x8x512xbf16>
    %155 = vector.shape_cast %154 : vector<1x8x512xbf16> to vector<8x512xbf16>
    %156 = arith.extf %155 : vector<8x512xbf16> to vector<8x512xf32>
    %157 = arith.truncf %148 : vector<8x128xf32> to vector<8x128xbf16>
    %c0_46 = arith.constant 0 : index
    %c0_47 = arith.constant 0 : index
    %158 = vector.load %arg4[%c0_46, %c0_47] : memref<128x512xbf16, #tpu.memory_space<vmem>>, vector<128x512xbf16>
    %cst_48 = arith.constant dense<0.000000e+00> : vector<8x512xf32>
    %159 = tpu.matmul %157, %158, %cst_48 {dimension_numbers = #tpu.dot_dimension_numbers<[1], [0], [0], [1], [0, 0, 1, 1], [], []>} : vector<8x128xbf16>, vector<128x512xbf16>, vector<8x512xf32> -> vector<8x512xf32>
    %160 = arith.addf %156, %159 : vector<8x512xf32>
    %161 = vector.extract_strided_slice %160 {offsets = [0, 0], sizes = [8, 128], strides = [1, 1]} : vector<8x512xf32> to vector<8x128xf32>
    %162 = arith.negf %161 : vector<8x128xf32>
    %163 = math.exp %162 : vector<8x128xf32>
    %cst_49 = arith.constant 1.000000e+00 : f32
    %164 = vector.broadcast %cst_49 : f32 to vector<8x128xf32>
    %165 = arith.addf %164, %163 : vector<8x128xf32>
    %166 = arith.divf %164, %165 : vector<8x128xf32>
    %167 = vector.extract_strided_slice %160 {offsets = [0, 128], sizes = [8, 128], strides = [1, 1]} : vector<8x512xf32> to vector<8x128xf32>
    %168 = arith.negf %167 : vector<8x128xf32>
    %169 = math.exp %168 : vector<8x128xf32>
    %cst_50 = arith.constant 1.000000e+00 : f32
    %170 = vector.broadcast %cst_50 : f32 to vector<8x128xf32>
    %171 = arith.addf %170, %169 : vector<8x128xf32>
    %172 = arith.divf %170, %171 : vector<8x128xf32>
    %173 = vector.extract_strided_slice %160 {offsets = [0, 256], sizes = [8, 128], strides = [1, 1]} : vector<8x512xf32> to vector<8x128xf32>
    %174 = math.tanh %173 : vector<8x128xf32>
    %175 = vector.extract_strided_slice %160 {offsets = [0, 384], sizes = [8, 128], strides = [1, 1]} : vector<8x512xf32> to vector<8x128xf32>
    %176 = arith.negf %175 : vector<8x128xf32>
    %177 = math.exp %176 : vector<8x128xf32>
    %cst_51 = arith.constant 1.000000e+00 : f32
    %178 = vector.broadcast %cst_51 : f32 to vector<8x128xf32>
    %179 = arith.addf %178, %177 : vector<8x128xf32>
    %180 = arith.divf %178, %179 : vector<8x128xf32>
    %181 = arith.mulf %172, %146 : vector<8x128xf32>
    %182 = arith.mulf %166, %174 : vector<8x128xf32>
    %183 = arith.addf %181, %182 : vector<8x128xf32>
    %184 = math.tanh %183 : vector<8x128xf32>
    %185 = arith.mulf %180, %184 : vector<8x128xf32>
    %186 = arith.index_cast %c4_i32 : i32 to index
    %c0_52 = arith.constant 0 : index
    %c0_53 = arith.constant 0 : index
    %187 = vector.load %arg3[%186, %c0_52, %c0_53] : memref<8x8x128xf32, #tpu.memory_space<vmem>>, vector<1x8x128xf32>
    %188 = vector.shape_cast %187 : vector<1x8x128xf32> to vector<8x128xf32>
    %189 = vector.shape_cast %185 : vector<8x128xf32> to vector<1x8x128xf32>
    tpu.vector_store %arg3[%186, %c0_52, %c0_53], %189 {strides = array<i32>} : memref<8x8x128xf32, #tpu.memory_space<vmem>>, vector<1x8x128xf32>,
    %c5_i32 = arith.constant 5 : i32
    %190 = arith.index_cast %c5_i32 : i32 to index
    %c0_54 = arith.constant 0 : index
    %c0_55 = arith.constant 0 : index
    %191 = vector.load %arg1[%190, %c0_54, %c0_55] : memref<8x8x512xbf16, #tpu.memory_space<vmem>>, vector<1x8x512xbf16>
    %192 = vector.shape_cast %191 : vector<1x8x512xbf16> to vector<8x512xbf16>
    %193 = arith.extf %192 : vector<8x512xbf16> to vector<8x512xf32>
    %194 = arith.truncf %185 : vector<8x128xf32> to vector<8x128xbf16>
    %c0_56 = arith.constant 0 : index
    %c0_57 = arith.constant 0 : index
    %195 = vector.load %arg4[%c0_56, %c0_57] : memref<128x512xbf16, #tpu.memory_space<vmem>>, vector<128x512xbf16>
    %cst_58 = arith.constant dense<0.000000e+00> : vector<8x512xf32>
    %196 = tpu.matmul %194, %195, %cst_58 {dimension_numbers = #tpu.dot_dimension_numbers<[1], [0], [0], [1], [0, 0, 1, 1], [], []>} : vector<8x128xbf16>, vector<128x512xbf16>, vector<8x512xf32> -> vector<8x512xf32>
    %197 = arith.addf %193, %196 : vector<8x512xf32>
    %198 = vector.extract_strided_slice %197 {offsets = [0, 0], sizes = [8, 128], strides = [1, 1]} : vector<8x512xf32> to vector<8x128xf32>
    %199 = arith.negf %198 : vector<8x128xf32>
    %200 = math.exp %199 : vector<8x128xf32>
    %cst_59 = arith.constant 1.000000e+00 : f32
    %201 = vector.broadcast %cst_59 : f32 to vector<8x128xf32>
    %202 = arith.addf %201, %200 : vector<8x128xf32>
    %203 = arith.divf %201, %202 : vector<8x128xf32>
    %204 = vector.extract_strided_slice %197 {offsets = [0, 128], sizes = [8, 128], strides = [1, 1]} : vector<8x512xf32> to vector<8x128xf32>
    %205 = arith.negf %204 : vector<8x128xf32>
    %206 = math.exp %205 : vector<8x128xf32>
    %cst_60 = arith.constant 1.000000e+00 : f32
    %207 = vector.broadcast %cst_60 : f32 to vector<8x128xf32>
    %208 = arith.addf %207, %206 : vector<8x128xf32>
    %209 = arith.divf %207, %208 : vector<8x128xf32>
    %210 = vector.extract_strided_slice %197 {offsets = [0, 256], sizes = [8, 128], strides = [1, 1]} : vector<8x512xf32> to vector<8x128xf32>
    %211 = math.tanh %210 : vector<8x128xf32>
    %212 = vector.extract_strided_slice %197 {offsets = [0, 384], sizes = [8, 128], strides = [1, 1]} : vector<8x512xf32> to vector<8x128xf32>
    %213 = arith.negf %212 : vector<8x128xf32>
    %214 = math.exp %213 : vector<8x128xf32>
    %cst_61 = arith.constant 1.000000e+00 : f32
    %215 = vector.broadcast %cst_61 : f32 to vector<8x128xf32>
    %216 = arith.addf %215, %214 : vector<8x128xf32>
    %217 = arith.divf %215, %216 : vector<8x128xf32>
    %218 = arith.mulf %209, %183 : vector<8x128xf32>
    %219 = arith.mulf %203, %211 : vector<8x128xf32>
    %220 = arith.addf %218, %219 : vector<8x128xf32>
    %221 = math.tanh %220 : vector<8x128xf32>
    %222 = arith.mulf %217, %221 : vector<8x128xf32>
    %223 = arith.index_cast %c5_i32 : i32 to index
    %c0_62 = arith.constant 0 : index
    %c0_63 = arith.constant 0 : index
    %224 = vector.load %arg3[%223, %c0_62, %c0_63] : memref<8x8x128xf32, #tpu.memory_space<vmem>>, vector<1x8x128xf32>
    %225 = vector.shape_cast %224 : vector<1x8x128xf32> to vector<8x128xf32>
    %226 = vector.shape_cast %222 : vector<8x128xf32> to vector<1x8x128xf32>
    tpu.vector_store %arg3[%223, %c0_62, %c0_63], %226 {strides = array<i32>} : memref<8x8x128xf32, #tpu.memory_space<vmem>>, vector<1x8x128xf32>,
    %c6_i32 = arith.constant 6 : i32
    %227 = arith.index_cast %c6_i32 : i32 to index
    %c0_64 = arith.constant 0 : index
    %c0_65 = arith.constant 0 : index
    %228 = vector.load %arg1[%227, %c0_64, %c0_65] : memref<8x8x512xbf16, #tpu.memory_space<vmem>>, vector<1x8x512xbf16>
    %229 = vector.shape_cast %228 : vector<1x8x512xbf16> to vector<8x512xbf16>
    %230 = arith.extf %229 : vector<8x512xbf16> to vector<8x512xf32>
    %231 = arith.truncf %222 : vector<8x128xf32> to vector<8x128xbf16>
    %c0_66 = arith.constant 0 : index
    %c0_67 = arith.constant 0 : index
    %232 = vector.load %arg4[%c0_66, %c0_67] : memref<128x512xbf16, #tpu.memory_space<vmem>>, vector<128x512xbf16>
    %cst_68 = arith.constant dense<0.000000e+00> : vector<8x512xf32>
    %233 = tpu.matmul %231, %232, %cst_68 {dimension_numbers = #tpu.dot_dimension_numbers<[1], [0], [0], [1], [0, 0, 1, 1], [], []>} : vector<8x128xbf16>, vector<128x512xbf16>, vector<8x512xf32> -> vector<8x512xf32>
    %234 = arith.addf %230, %233 : vector<8x512xf32>
    %235 = vector.extract_strided_slice %234 {offsets = [0, 0], sizes = [8, 128], strides = [1, 1]} : vector<8x512xf32> to vector<8x128xf32>
    %236 = arith.negf %235 : vector<8x128xf32>
    %237 = math.exp %236 : vector<8x128xf32>
    %cst_69 = arith.constant 1.000000e+00 : f32
    %238 = vector.broadcast %cst_69 : f32 to vector<8x128xf32>
    %239 = arith.addf %238, %237 : vector<8x128xf32>
    %240 = arith.divf %238, %239 : vector<8x128xf32>
    %241 = vector.extract_strided_slice %234 {offsets = [0, 128], sizes = [8, 128], strides = [1, 1]} : vector<8x512xf32> to vector<8x128xf32>
    %242 = arith.negf %241 : vector<8x128xf32>
    %243 = math.exp %242 : vector<8x128xf32>
    %cst_70 = arith.constant 1.000000e+00 : f32
    %244 = vector.broadcast %cst_70 : f32 to vector<8x128xf32>
    %245 = arith.addf %244, %243 : vector<8x128xf32>
    %246 = arith.divf %244, %245 : vector<8x128xf32>
    %247 = vector.extract_strided_slice %234 {offsets = [0, 256], sizes = [8, 128], strides = [1, 1]} : vector<8x512xf32> to vector<8x128xf32>
    %248 = math.tanh %247 : vector<8x128xf32>
    %249 = vector.extract_strided_slice %234 {offsets = [0, 384], sizes = [8, 128], strides = [1, 1]} : vector<8x512xf32> to vector<8x128xf32>
    %250 = arith.negf %249 : vector<8x128xf32>
    %251 = math.exp %250 : vector<8x128xf32>
    %cst_71 = arith.constant 1.000000e+00 : f32
    %252 = vector.broadcast %cst_71 : f32 to vector<8x128xf32>
    %253 = arith.addf %252, %251 : vector<8x128xf32>
    %254 = arith.divf %252, %253 : vector<8x128xf32>
    %255 = arith.mulf %246, %220 : vector<8x128xf32>
    %256 = arith.mulf %240, %248 : vector<8x128xf32>
    %257 = arith.addf %255, %256 : vector<8x128xf32>
    %258 = math.tanh %257 : vector<8x128xf32>
    %259 = arith.mulf %254, %258 : vector<8x128xf32>
    %260 = arith.index_cast %c6_i32 : i32 to index
    %c0_72 = arith.constant 0 : index
    %c0_73 = arith.constant 0 : index
    %261 = vector.load %arg3[%260, %c0_72, %c0_73] : memref<8x8x128xf32, #tpu.memory_space<vmem>>, vector<1x8x128xf32>
    %262 = vector.shape_cast %261 : vector<1x8x128xf32> to vector<8x128xf32>
    %263 = vector.shape_cast %259 : vector<8x128xf32> to vector<1x8x128xf32>
    tpu.vector_store %arg3[%260, %c0_72, %c0_73], %263 {strides = array<i32>} : memref<8x8x128xf32, #tpu.memory_space<vmem>>, vector<1x8x128xf32>,
    %c7_i32 = arith.constant 7 : i32
    %264 = arith.index_cast %c7_i32 : i32 to index
    %c0_74 = arith.constant 0 : index
    %c0_75 = arith.constant 0 : index
    %265 = vector.load %arg1[%264, %c0_74, %c0_75] : memref<8x8x512xbf16, #tpu.memory_space<vmem>>, vector<1x8x512xbf16>
    %266 = vector.shape_cast %265 : vector<1x8x512xbf16> to vector<8x512xbf16>
    %267 = arith.extf %266 : vector<8x512xbf16> to vector<8x512xf32>
    %268 = arith.truncf %259 : vector<8x128xf32> to vector<8x128xbf16>
    %c0_76 = arith.constant 0 : index
    %c0_77 = arith.constant 0 : index
    %269 = vector.load %arg4[%c0_76, %c0_77] : memref<128x512xbf16, #tpu.memory_space<vmem>>, vector<128x512xbf16>
    %cst_78 = arith.constant dense<0.000000e+00> : vector<8x512xf32>
    %270 = tpu.matmul %268, %269, %cst_78 {dimension_numbers = #tpu.dot_dimension_numbers<[1], [0], [0], [1], [0, 0, 1, 1], [], []>} : vector<8x128xbf16>, vector<128x512xbf16>, vector<8x512xf32> -> vector<8x512xf32>
    %271 = arith.addf %267, %270 : vector<8x512xf32>
    %272 = vector.extract_strided_slice %271 {offsets = [0, 0], sizes = [8, 128], strides = [1, 1]} : vector<8x512xf32> to vector<8x128xf32>
    %273 = arith.negf %272 : vector<8x128xf32>
    %274 = math.exp %273 : vector<8x128xf32>
    %cst_79 = arith.constant 1.000000e+00 : f32
    %275 = vector.broadcast %cst_79 : f32 to vector<8x128xf32>
    %276 = arith.addf %275, %274 : vector<8x128xf32>
    %277 = arith.divf %275, %276 : vector<8x128xf32>
    %278 = vector.extract_strided_slice %271 {offsets = [0, 128], sizes = [8, 128], strides = [1, 1]} : vector<8x512xf32> to vector<8x128xf32>
    %279 = arith.negf %278 : vector<8x128xf32>
    %280 = math.exp %279 : vector<8x128xf32>
    %cst_80 = arith.constant 1.000000e+00 : f32
    %281 = vector.broadcast %cst_80 : f32 to vector<8x128xf32>
    %282 = arith.addf %281, %280 : vector<8x128xf32>
    %283 = arith.divf %281, %282 : vector<8x128xf32>
    %284 = vector.extract_strided_slice %271 {offsets = [0, 256], sizes = [8, 128], strides = [1, 1]} : vector<8x512xf32> to vector<8x128xf32>
    %285 = math.tanh %284 : vector<8x128xf32>
    %286 = vector.extract_strided_slice %271 {offsets = [0, 384], sizes = [8, 128], strides = [1, 1]} : vector<8x512xf32> to vector<8x128xf32>
    %287 = arith.negf %286 : vector<8x128xf32>
    %288 = math.exp %287 : vector<8x128xf32>
    %cst_81 = arith.constant 1.000000e+00 : f32
    %289 = vector.broadcast %cst_81 : f32 to vector<8x128xf32>
    %290 = arith.addf %289, %288 : vector<8x128xf32>
    %291 = arith.divf %289, %290 : vector<8x128xf32>
    %292 = arith.mulf %283, %257 : vector<8x128xf32>
    %293 = arith.mulf %277, %285 : vector<8x128xf32>
    %294 = arith.addf %292, %293 : vector<8x128xf32>
    %295 = math.tanh %294 : vector<8x128xf32>
    %296 = arith.mulf %291, %295 : vector<8x128xf32>
    %297 = arith.index_cast %c7_i32 : i32 to index
    %c0_82 = arith.constant 0 : index
    %c0_83 = arith.constant 0 : index
    %298 = vector.load %arg3[%297, %c0_82, %c0_83] : memref<8x8x128xf32, #tpu.memory_space<vmem>>, vector<1x8x128xf32>
    %299 = vector.shape_cast %298 : vector<1x8x128xf32> to vector<8x128xf32>
    %300 = vector.shape_cast %296 : vector<8x128xf32> to vector<1x8x128xf32>
    tpu.vector_store %arg3[%297, %c0_82, %c0_83], %300 {strides = array<i32>} : memref<8x8x128xf32, #tpu.memory_space<vmem>>, vector<1x8x128xf32>,
    %c8_i32 = arith.constant 8 : i32
    %c0_84 = arith.constant 0 : index
    %c0_85 = arith.constant 0 : index
    %301 = vector.load %arg5[%c0_84, %c0_85] : memref<8x128xf32, #tpu.memory_space<vmem>>, vector<8x128xf32>
    tpu.vector_store %arg5[%c0_84, %c0_85], %296 {strides = array<i32>} : memref<8x128xf32, #tpu.memory_space<vmem>>, vector<8x128xf32>,
    %c0_86 = arith.constant 0 : index
    %c0_87 = arith.constant 0 : index
    %302 = vector.load %arg6[%c0_86, %c0_87] : memref<8x128xf32, #tpu.memory_space<vmem>>, vector<8x128xf32>
    tpu.vector_store %arg6[%c0_86, %c0_87], %294 {strides = array<i32>} : memref<8x128xf32, #tpu.memory_space<vmem>>, vector<8x128xf32>,
    return
  }
  func.func @transform_0(%arg0: i32) -> (i32, i32, i32) {
    %c0_i32 = arith.constant 0 : i32
    %c0_i32_0 = arith.constant 0 : i32
    %c0_i32_1 = arith.constant 0 : i32
    return %arg0, %c0_i32, %c0_i32_0 : i32, i32, i32
  }
  func.func @transform_2(%arg0: i32) -> (i32, i32, i32) {
    %c0_i32 = arith.constant 0 : i32
    %c0_i32_0 = arith.constant 0 : i32
    %c0_i32_1 = arith.constant 0 : i32
    return %arg0, %c0_i32, %c0_i32_0 : i32, i32, i32
  }
}

</mosaic_0001>

<llo_original>
// kernel: temporal_lstm_forward.1
$region0: #{temporal_lstm_forward.1}
  #allocation0 [shape = 'u32[]', space=smem, size = 0x4, offset = 0x4, fixed_abs, tag = 'smem constant byte address 0x4 - core index']
  #allocation1 [shape = 'u32[72,128]{1,0:T(1,128)}', space=vmem, size = 0x9000, scoped, tag = 'internal scratch']
  #allocation2 [shape = 'bf16[128,512]{1,0:T(8,128)(2,1)}', space=vmem, size = 0x20000, scoped, tag = 'scratch operand']
  #allocation3 [shape = 'f32[8,128]{1,0:T(8,128)}', space=vmem, size = 0x1000, scoped, tag = 'scratch operand']
  #allocation4 [shape = 'f32[8,128]{1,0:T(8,128)}', space=vmem, size = 0x1000, scoped, tag = 'scratch operand']
  #allocation5 [shape = 's32[1]{0}', space=sflag, size = 0x4, scoped, tag = 'scratch operand']
  #allocation6 [shape = 's32[]', space=sflag, size = 0x4, offset = 0, fixed_abs, tag = 'sflag constant byte address 0x0 - dummy sync flag']
  %s0 = inlined_call_operand.vmem [shape: bf16[8,8,512], index: 0, kind: input, shape index: {}]
  %s1 = inlined_call_operand.vmem [shape: bf16[128,512], index: 1, kind: input, shape index: {}]
  %s2 = inlined_call_operand.vmem [shape: f32[8,8,128], index: 2, kind: output, shape index: {}]
  %s3 = sld [smem:[#allocation0]]
  $region37: #{temporal_lstm_forward.1} parent=0
    _
  %s5 = ssub.s32 1, %s3
  %s6 = scalar_select 0, %s5, %s3
  // Predicated region
  $region2: #{temporal_lstm_forward.1} parent=0 // pred_check
    _
  $region3: #{temporal_lstm_forward.1} parent=0 // pred_check_branch
    %8 = sbr.rel (0) target = $region5
  $region4: #{temporal_lstm_forward.1} parent=0 // pred_region
    _
  $region5: #{temporal_lstm_forward.1} parent=0 // pred_fallthru
    _
  %p9 = scmp.eq.s32.totalorder 0, 0
  // Predicated region
  $region6: #{temporal_lstm_forward.1} parent=0 // pred_check
    %p10 = pneg %p9
  $region7: #{temporal_lstm_forward.1} parent=0 // pred_check_branch
    %12 = sbr.rel (%p10) target = $region9
  $region8: #{temporal_lstm_forward.1} parent=0 // pred_region
    // Predicated region
    $region10: #{temporal_lstm_forward.1} parent=8 // pred_check
      _
    $region11: #{temporal_lstm_forward.1} parent=8 // pred_check_branch
      %14 = sbr.rel (0) target = $region13
    $region12: #{temporal_lstm_forward.1} parent=8 // pred_region
      loop: start=0, step=1, limit=1
      $region14: #{temporal_lstm_forward.1} parent=12 // loop_pre_header
        _
      $region15: #{temporal_lstm_forward.1} parent=12 // loop_header
        %s16 = sphi 0, %s20
        %p17 = scmp.ge.s32.totalorder %s16, 1
        %s21 = sphi %s1, %s1
        %s22 = sphi [#allocation2], [#allocation2]
      $region16: #{temporal_lstm_forward.1} parent=12 // loop_header_branch
        %19 = sbr.rel (%p17) target = $region20
      $region17: #{temporal_lstm_forward.1} parent=12 // loop_body
        %v23 = vld [vmem:[%s21] sm:$0xff]
        %24 = vst [vmem:[%s22] sm:$0xff] %v23
        %v25 = vld [vmem:[%s21 + $0x8] sm:$0xff]
        %26 = vst [vmem:[%s22 + $0x8] sm:$0xff] %v25
        %v27 = vld [vmem:[%s21 + $0x10] sm:$0xff]
        %28 = vst [vmem:[%s22 + $0x10] sm:$0xff] %v27
        %v29 = vld [vmem:[%s21 + $0x18] sm:$0xff]
        %30 = vst [vmem:[%s22 + $0x18] sm:$0xff] %v29
        %v31 = vld [vmem:[%s21 + $0x20] sm:$0xff]
        %32 = vst [vmem:[%s22 + $0x20] sm:$0xff] %v31
        %v33 = vld [vmem:[%s21 + $0x28] sm:$0xff]
        %34 = vst [vmem:[%s22 + $0x28] sm:$0xff] %v33
        %v35 = vld [vmem:[%s21 + $0x30] sm:$0xff]
        %36 = vst [vmem:[%s22 + $0x30] sm:$0xff] %v35
        %v37 = vld [vmem:[%s21 + $0x38] sm:$0xff]
        %38 = vst [vmem:[%s22 + $0x38] sm:$0xff] %v37
        %v39 = vld [vmem:[%s21 + $0x40] sm:$0xff]
        %40 = vst [vmem:[%s22 + $0x40] sm:$0xff] %v39
        %v41 = vld [vmem:[%s21 + $0x48] sm:$0xff]
        %42 = vst [vmem:[%s22 + $0x48] sm:$0xff] %v41
        %v43 = vld [vmem:[%s21 + $0x50] sm:$0xff]
        %44 = vst [vmem:[%s22 + $0x50] sm:$0xff] %v43
        %v45 = vld [vmem:[%s21 + $0x58] sm:$0xff]
        %46 = vst [vmem:[%s22 + $0x58] sm:$0xff] %v45
        %v47 = vld [vmem:[%s21 + $0x60] sm:$0xff]
        %48 = vst [vmem:[%s22 + $0x60] sm:$0xff] %v47
        %v49 = vld [vmem:[%s21 + $0x68] sm:$0xff]
        %50 = vst [vmem:[%s22 + $0x68] sm:$0xff] %v49
        %v51 = vld [vmem:[%s21 + $0x70] sm:$0xff]
        %52 = vst [vmem:[%s22 + $0x70] sm:$0xff] %v51
        %v53 = vld [vmem:[%s21 + $0x78] sm:$0xff]
        %54 = vst [vmem:[%s22 + $0x78] sm:$0xff] %v53
        %v55 = vld [vmem:[%s21 + $0x80] sm:$0xff]
        %56 = vst [vmem:[%s22 + $0x80] sm:$0xff] %v55
        %v57 = vld [vmem:[%s21 + $0x88] sm:$0xff]
        %58 = vst [vmem:[%s22 + $0x88] sm:$0xff] %v57
        %v59 = vld [vmem:[%s21 + $0x90] sm:$0xff]
        %60 = vst [vmem:[%s22 + $0x90] sm:$0xff] %v59
        %v61 = vld [vmem:[%s21 + $0x98] sm:$0xff]
        %62 = vst [vmem:[%s22 + $0x98] sm:$0xff] %v61
        %v63 = vld [vmem:[%s21 + $0xa0] sm:$0xff]
        %64 = vst [vmem:[%s22 + $0xa0] sm:$0xff] %v63
        %v65 = vld [vmem:[%s21 + $0xa8] sm:$0xff]
        %66 = vst [vmem:[%s22 + $0xa8] sm:$0xff] %v65
        %v67 = vld [vmem:[%s21 + $0xb0] sm:$0xff]
        %68 = vst [vmem:[%s22 + $0xb0] sm:$0xff] %v67
        %v69 = vld [vmem:[%s21 + $0xb8] sm:$0xff]
        %70 = vst [vmem:[%s22 + $0xb8] sm:$0xff] %v69
        %v71 = vld [vmem:[%s21 + $0xc0] sm:$0xff]
        %72 = vst [vmem:[%s22 + $0xc0] sm:$0xff] %v71
        %v73 = vld [vmem:[%s21 + $0xc8] sm:$0xff]
        %74 = vst [vmem:[%s22 + $0xc8] sm:$0xff] %v73
        %v75 = vld [vmem:[%s21 + $0xd0] sm:$0xff]
        %76 = vst [vmem:[%s22 + $0xd0] sm:$0xff] %v75
        %v77 = vld [vmem:[%s21 + $0xd8] sm:$0xff]
        %78 = vst [vmem:[%s22 + $0xd8] sm:$0xff] %v77
        %v79 = vld [vmem:[%s21 + $0xe0] sm:$0xff]
        %80 = vst [vmem:[%s22 + $0xe0] sm:$0xff] %v79
        %v81 = vld [vmem:[%s21 + $0xe8] sm:$0xff]
        %82 = vst [vmem:[%s22 + $0xe8] sm:$0xff] %v81
        %v83 = vld [vmem:[%s21 + $0xf0] sm:$0xff]
        %84 = vst [vmem:[%s22 + $0xf0] sm:$0xff] %v83
        %v85 = vld [vmem:[%s21 + $0xf8] sm:$0xff]
        %86 = vst [vmem:[%s22 + $0xf8] sm:$0xff] %v85
      $region18: #{temporal_lstm_forward.1} parent=12 // loop_footer
        %s20 = sadd.s32 1, %s16
      $region19: #{temporal_lstm_forward.1} parent=12 // loop_footer_branch
        %15 = sbr.rel target = $region15
      $region20: #{temporal_lstm_forward.1} parent=12 // loop_exit
        _
    $region13: #{temporal_lstm_forward.1} parent=8 // pred_fallthru
      _
    // Predicated region
    $region21: #{temporal_lstm_forward.1} parent=8 // pred_check
      _
    $region22: #{temporal_lstm_forward.1} parent=8 // pred_check_branch
      %88 = sbr.rel target = $region24
    $region23: #{temporal_lstm_forward.1} parent=8 // pred_region
      _
    $region24: #{temporal_lstm_forward.1} parent=8 // pred_fallthru
      _
    // Predicated region
    $region25: #{temporal_lstm_forward.1} parent=8 // pred_check
      _
    $region26: #{temporal_lstm_forward.1} parent=8 // pred_check_branch
      %91 = sbr.rel (0) target = $region28
    $region27: #{temporal_lstm_forward.1} parent=8 // pred_region
      %92 = vsyncadd [#allocation5], 4096
    $region28: #{temporal_lstm_forward.1} parent=8 // pred_fallthru
      _
    %93 = vst [vmem:[#allocation3] sm:$0xff] 0.0
    %94 = vst [vmem:[#allocation4] sm:$0xff] 0.0
    %s95 = smul.u32 4, 16
    %s96 = smul.u32 %s95, 4
    %s97 = sshll.u32 %s96, 4
    %98 = dma.done [#allocation5], %s97
  $region9: #{temporal_lstm_forward.1} parent=0 // pred_fallthru
    _
  %v99 = vld [vmem:[#allocation3] sm:$0xff]
  %v100 = vld [vmem:[#allocation4] sm:$0xff]
  %v101 = vld [vmem:[%s0] sm:$0xff]
  %v102 = vld [vmem:[%s0 + $0x8] sm:$0xff]
  %v103 = vunpack.c.l.bf16 %v101
  %v104 = vunpack.c.h.bf16 %v101
  %v105 = vunpack.c.l.bf16 %v102
  %v106 = vunpack.c.h.bf16 %v102
  %v107 = vpack.c.bf16 %v99, %v99
  %v108 = vld [vmem:[#allocation2] sm:$0xff]
  %v109 = vld [vmem:[#allocation2 + $0x8] sm:$0xff]
  %v110 = vld [vmem:[#allocation2 + $0x10] sm:$0xff]
  %v111 = vld [vmem:[#allocation2 + $0x18] sm:$0xff]
  %v112 = vld [vmem:[#allocation2 + $0x20] sm:$0xff]
  %v113 = vld [vmem:[#allocation2 + $0x28] sm:$0xff]
  %v114 = vld [vmem:[#allocation2 + $0x30] sm:$0xff]
  %v115 = vld [vmem:[#allocation2 + $0x38] sm:$0xff]
  %v116 = vld [vmem:[#allocation2 + $0x40] sm:$0xff]
  %v117 = vld [vmem:[#allocation2 + $0x48] sm:$0xff]
  %v118 = vld [vmem:[#allocation2 + $0x50] sm:$0xff]
  %v119 = vld [vmem:[#allocation2 + $0x58] sm:$0xff]
  %v120 = vld [vmem:[#allocation2 + $0x60] sm:$0xff]
  %v121 = vld [vmem:[#allocation2 + $0x68] sm:$0xff]
  %v122 = vld [vmem:[#allocation2 + $0x70] sm:$0xff]
  %v123 = vld [vmem:[#allocation2 + $0x78] sm:$0xff]
  %v124 = vld [vmem:[#allocation2 + $0x80] sm:$0xff]
  %v125 = vld [vmem:[#allocation2 + $0x88] sm:$0xff]
  %v126 = vld [vmem:[#allocation2 + $0x90] sm:$0xff]
  %v127 = vld [vmem:[#allocation2 + $0x98] sm:$0xff]
  %v128 = vld [vmem:[#allocation2 + $0xa0] sm:$0xff]
  %v129 = vld [vmem:[#allocation2 + $0xa8] sm:$0xff]
  %v130 = vld [vmem:[#allocation2 + $0xb0] sm:$0xff]
  %v131 = vld [vmem:[#allocation2 + $0xb8] sm:$0xff]
  %v132 = vld [vmem:[#allocation2 + $0xc0] sm:$0xff]
  %v133 = vld [vmem:[#allocation2 + $0xc8] sm:$0xff]
  %v134 = vld [vmem:[#allocation2 + $0xd0] sm:$0xff]
  %v135 = vld [vmem:[#allocation2 + $0xd8] sm:$0xff]
  %v136 = vld [vmem:[#allocation2 + $0xe0] sm:$0xff]
  %v137 = vld [vmem:[#allocation2 + $0xe8] sm:$0xff]
  %v138 = vld [vmem:[#allocation2 + $0xf0] sm:$0xff]
  %v139 = vld [vmem:[#allocation2 + $0xf8] sm:$0xff]
  %v172 = vunpack.c.l.b16 %v108
  %v173 = vunpack.c.h.b16 %v108
  %v174 = vunpack.c.l.b16 %v109
  %v175 = vunpack.c.h.b16 %v109
  %v176 = vunpack.c.l.b16 %v110
  %v177 = vunpack.c.h.b16 %v110
  %v178 = vunpack.c.l.b16 %v111
  %v179 = vunpack.c.h.b16 %v111
  %v180 = vunpack.c.l.b16 %v112
  %v181 = vunpack.c.h.b16 %v112
  %v182 = vunpack.c.l.b16 %v113
  %v183 = vunpack.c.h.b16 %v113
  %v184 = vunpack.c.l.b16 %v114
  %v185 = vunpack.c.h.b16 %v114
  %v186 = vunpack.c.l.b16 %v115
  %v187 = vunpack.c.h.b16 %v115
  %v188 = vunpack.c.l.b16 %v116
  %v189 = vunpack.c.h.b16 %v116
  %v190 = vunpack.c.l.b16 %v117
  %v191 = vunpack.c.h.b16 %v117
  %v192 = vunpack.c.l.b16 %v118
  %v193 = vunpack.c.h.b16 %v118
  %v194 = vunpack.c.l.b16 %v119
  %v195 = vunpack.c.h.b16 %v119
  %v196 = vunpack.c.l.b16 %v120
  %v197 = vunpack.c.h.b16 %v120
  %v198 = vunpack.c.l.b16 %v121
  %v199 = vunpack.c.h.b16 %v121
  %v200 = vunpack.c.l.b16 %v122
  %v201 = vunpack.c.h.b16 %v122
  %v202 = vunpack.c.l.b16 %v123
  %v203 = vunpack.c.h.b16 %v123
  %v204 = vunpack.c.l.b16 %v124
  %v205 = vunpack.c.h.b16 %v124
  %v206 = vunpack.c.l.b16 %v125
  %v207 = vunpack.c.h.b16 %v125
  %v208 = vunpack.c.l.b16 %v126
  %v209 = vunpack.c.h.b16 %v126
  %v210 = vunpack.c.l.b16 %v127
  %v211 = vunpack.c.h.b16 %v127
  %v212 = vunpack.c.l.b16 %v128
  %v213 = vunpack.c.h.b16 %v128
  %v214 = vunpack.c.l.b16 %v129
  %v215 = vunpack.c.h.b16 %v129
  %v216 = vunpack.c.l.b16 %v130
  %v217 = vunpack.c.h.b16 %v130
  %v218 = vunpack.c.l.b16 %v131
  %v219 = vunpack.c.h.b16 %v131
  %v220 = vunpack.c.l.b16 %v132
  %v221 = vunpack.c.h.b16 %v132
  %v222 = vunpack.c.l.b16 %v133
  %v223 = vunpack.c.h.b16 %v133
  %v224 = vunpack.c.l.b16 %v134
  %v225 = vunpack.c.h.b16 %v134
  %v226 = vunpack.c.l.b16 %v135
  %v227 = vunpack.c.h.b16 %v135
  %v228 = vunpack.c.l.b16 %v136
  %v229 = vunpack.c.h.b16 %v136
  %v230 = vunpack.c.l.b16 %v137
  %v231 = vunpack.c.h.b16 %v137
  %v232 = vunpack.c.l.b16 %v138
  %v233 = vunpack.c.h.b16 %v138
  %v234 = vunpack.c.l.b16 %v139
  %v235 = vunpack.c.h.b16 %v139
  %v236 = vpack.c.b16 %v176, %v172
  %v237 = vpack.c.b16 %v177, %v173
  %v238 = vpack.c.b16 %v178, %v174
  %v239 = vpack.c.b16 %v179, %v175
  %v240 = vpack.c.b16 %v184, %v180
  %v241 = vpack.c.b16 %v185, %v181
  %v242 = vpack.c.b16 %v186, %v182
  %v243 = vpack.c.b16 %v187, %v183
  %v244 = vpack.c.b16 %v192, %v188
  %v245 = vpack.c.b16 %v193, %v189
  %v246 = vpack.c.b16 %v194, %v190
  %v247 = vpack.c.b16 %v195, %v191
  %v248 = vpack.c.b16 %v200, %v196
  %v249 = vpack.c.b16 %v201, %v197
  %v250 = vpack.c.b16 %v202, %v198
  %v251 = vpack.c.b16 %v203, %v199
  %v252 = vpack.c.b16 %v208, %v204
  %v253 = vpack.c.b16 %v209, %v205
  %v254 = vpack.c.b16 %v210, %v206
  %v255 = vpack.c.b16 %v211, %v207
  %v256 = vpack.c.b16 %v216, %v212
  %v257 = vpack.c.b16 %v217, %v213
  %v258 = vpack.c.b16 %v218, %v214
  %v259 = vpack.c.b16 %v219, %v215
  %v260 = vpack.c.b16 %v224, %v220
  %v261 = vpack.c.b16 %v225, %v221
  %v262 = vpack.c.b16 %v226, %v222
  %v263 = vpack.c.b16 %v227, %v223
  %v264 = vpack.c.b16 %v232, %v228
  %v265 = vpack.c.b16 %v233, %v229
  %v266 = vpack.c.b16 %v234, %v230
  %v267 = vpack.c.b16 %v235, %v231
  %300 = vmatpush.bf16.msra.mxu0 %v264
  %301 = vmatpush.bf16.msra.mxu0 %v260
  %302 = vmatpush.bf16.msra.mxu0 %v256
  %303 = vmatpush.bf16.msra.mxu0 %v252
  %304 = vmatpush.bf16.msra.mxu0 %v248
  %305 = vmatpush.bf16.msra.mxu0 %v244
  %306 = vmatpush.bf16.msra.mxu0 %v240
  %307 = vmatpush.bf16.msra.mxu0 %v236
  %308 = vmatmul.bf16.gmra.mxu0 %v107
  %v309 = vpop.f32.mrf.mxu0
  %v310 = vadd.f32 0.0, %v309
  %v311 = vpop.f32.mrf.mxu0
  %312 = vdwg.mxu0
  %313 = vmatpush.bf16.msra.mxu0 %v265
  %314 = vmatpush.bf16.msra.mxu0 %v261
  %315 = vmatpush.bf16.msra.mxu0 %v257
  %316 = vmatpush.bf16.msra.mxu0 %v253
  %317 = vmatpush.bf16.msra.mxu0 %v249
  %318 = vmatpush.bf16.msra.mxu0 %v245
  %319 = vmatpush.bf16.msra.mxu0 %v241
  %320 = vmatpush.bf16.msra.mxu0 %v237
  %321 = vmatmul.bf16.gmra.mxu0 %v107
  %v322 = vpop.f32.mrf.mxu0
  %v323 = vadd.f32 0.0, %v322
  %v324 = vpop.f32.mrf.mxu0
  %325 = vdwg.mxu0
  %326 = vmatpush.bf16.msra.mxu0 %v266
  %327 = vmatpush.bf16.msra.mxu0 %v262
  %328 = vmatpush.bf16.msra.mxu0 %v258
  %329 = vmatpush.bf16.msra.mxu0 %v254
  %330 = vmatpush.bf16.msra.mxu0 %v250
  %331 = vmatpush.bf16.msra.mxu0 %v246
  %332 = vmatpush.bf16.msra.mxu0 %v242
  %333 = vmatpush.bf16.msra.mxu0 %v238
  %334 = vmatmul.bf16.gmra.mxu0 %v107
  %v335 = vpop.f32.mrf.mxu0
  %v336 = vadd.f32 0.0, %v335
  %v337 = vpop.f32.mrf.mxu0
  %338 = vdwg.mxu0
  %339 = vmatpush.bf16.msra.mxu0 %v267
  %340 = vmatpush.bf16.msra.mxu0 %v263
  %341 = vmatpush.bf16.msra.mxu0 %v259
  %342 = vmatpush.bf16.msra.mxu0 %v255
  %343 = vmatpush.bf16.msra.mxu0 %v251
  %344 = vmatpush.bf16.msra.mxu0 %v247
  %345 = vmatpush.bf16.msra.mxu0 %v243
  %346 = vmatpush.bf16.msra.mxu0 %v239
  %347 = vmatmul.bf16.gmra.mxu0 %v107
  %v348 = vpop.f32.mrf.mxu0
  %v349 = vadd.f32 0.0, %v348
  %v350 = vpop.f32.mrf.mxu0
  %351 = vdwg.mxu0
  %v352 = vadd.f32 %v103, %v310
  %v353 = vadd.f32 %v104, %v323
  %v354 = vadd.f32 %v105, %v336
  %v355 = vadd.f32 %v106, %v349
  %v356 = vxor.u32 %v352, 2147483648
  %v357 = vmul.f32 %v356, 1.442695
  %v358 = vpow.pop %v357
  %v359 = vadd.f32 %v358, 1.0
  %v360 = vrcp.pop %v359
  %v361 = vmul.f32 %v359, %v360
  %v362 = vsub.f32 1.0, %v361
  %v363 = vmul.f32 %v360, %v362
  %v364 = vadd.f32 %v360, %v363
  %vm365 = vweird.f32 %v359
  %vm366 = vweird.f32 %v360
  %vm367 = vmor %vm365, %vm366
  %v368 = vsel %vm367, %v360, %v364
  %v369 = vand.u32 2147483647, %v359
  %vm370 = vcmp.eq.f32.partialorder %v369, 8.507059e+37
  %v371 = vand.u32 %v359, 2147483648
  %v372 = vor.u32 1.1754944e-38, %v371
  %v373 = vsel %vm370, %v372, %v368
  %v374 = vmul.f32 1.0, %v373
  %v375 = vxor.u32 %v353, 2147483648
  %v376 = vmul.f32 %v375, 1.442695
  %v377 = vpow.pop %v376
  %v378 = vadd.f32 %v377, 1.0
  %v379 = vrcp.pop %v378
  %v380 = vmul.f32 %v378, %v379
  %v381 = vsub.f32 1.0, %v380
  %v382 = vmul.f32 %v379, %v381
  %v383 = vadd.f32 %v379, %v382
  %vm384 = vweird.f32 %v378
  %vm385 = vweird.f32 %v379
  %vm386 = vmor %vm384, %vm385
  %v387 = vsel %vm386, %v379, %v383
  %v388 = vand.u32 2147483647, %v378
  %vm389 = vcmp.eq.f32.partialorder %v388, 8.507059e+37
  %v390 = vand.u32 %v378, 2147483648
  %v391 = vor.u32 1.1754944e-38, %v390
  %v392 = vsel %vm389, %v391, %v387
  %v393 = vmul.f32 1.0, %v392
  %v394 = vtanh.pop %v354
  %v395 = vxor.u32 %v355, 2147483648
  %v396 = vmul.f32 %v395, 1.442695
  %v397 = vpow.pop %v396
  %v398 = vadd.f32 %v397, 1.0
  %v399 = vrcp.pop %v398
  %v400 = vmul.f32 %v398, %v399
  %v401 = vsub.f32 1.0, %v400
  %v402 = vmul.f32 %v399, %v401
  %v403 = vadd.f32 %v399, %v402
  %vm404 = vweird.f32 %v398
  %vm405 = vweird.f32 %v399
  %vm406 = vmor %vm404, %vm405
  %v407 = vsel %vm406, %v399, %v403
  %v408 = vand.u32 2147483647, %v398
  %vm409 = vcmp.eq.f32.partialorder %v408, 8.507059e+37
  %v410 = vand.u32 %v398, 2147483648
  %v411 = vor.u32 1.1754944e-38, %v410
  %v412 = vsel %vm409, %v411, %v407
  %v413 = vmul.f32 1.0, %v412
  %v414 = vmul.f32 %v393, %v100
  %v415 = vmul.f32 %v374, %v394
  %v416 = vadd.f32 %v414, %v415
  %v417 = vtanh.pop %v416
  %v418 = vmul.f32 %v413, %v417
  %419 = vst [vmem:[%s2] sm:$0xff] %v418
  %s420 = scalar_lea.vmem %s0, 16
  %v421 = vld [vmem:[%s420] sm:$0xff]
  %v422 = vld [vmem:[%s420 + $0x8] sm:$0xff]
  %v423 = vunpack.c.l.bf16 %v421
  %v424 = vunpack.c.h.bf16 %v421
  %v425 = vunpack.c.l.bf16 %v422
  %v426 = vunpack.c.h.bf16 %v422
  %v427 = vpack.c.bf16 %v418, %v418
  %v428 = vld [vmem:[#allocation2] sm:$0xff]
  %v429 = vld [vmem:[#allocation2 + $0x8] sm:$0xff]
  %v430 = vld [vmem:[#allocation2 + $0x10] sm:$0xff]
  %v431 = vld [vmem:[#allocation2 + $0x18] sm:$0xff]
  %v432 = vld [vmem:[#allocation2 + $0x20] sm:$0xff]
  %v433 = vld [vmem:[#allocation2 + $0x28] sm:$0xff]
  %v434 = vld [vmem:[#allocation2 + $0x30] sm:$0xff]
  %v435 = vld [vmem:[#allocation2 + $0x38] sm:$0xff]
  %v436 = vld [vmem:[#allocation2 + $0x40] sm:$0xff]
  %v437 = vld [vmem:[#allocation2 + $0x48] sm:$0xff]
  %v438 = vld [vmem:[#allocation2 + $0x50] sm:$0xff]
  %v439 = vld [vmem:[#allocation2 + $0x58] sm:$0xff]
  %v440 = vld [vmem:[#allocation2 + $0x60] sm:$0xff]
  %v441 = vld [vmem:[#allocation2 + $0x68] sm:$0xff]
  %v442 = vld [vmem:[#allocation2 + $0x70] sm:$0xff]
  %v443 = vld [vmem:[#allocation2 + $0x78] sm:$0xff]
  %v444 = vld [vmem:[#allocation2 + $0x80] sm:$0xff]
  %v445 = vld [vmem:[#allocation2 + $0x88] sm:$0xff]
  %v446 = vld [vmem:[#allocation2 + $0x90] sm:$0xff]
  %v447 = vld [vmem:[#allocation2 + $0x98] sm:$0xff]
  %v448 = vld [vmem:[#allocation2 + $0xa0] sm:$0xff]
  %v449 = vld [vmem:[#allocation2 + $0xa8] sm:$0xff]
  %v450 = vld [vmem:[#allocation2 + $0xb0] sm:$0xff]
  %v451 = vld [vmem:[#allocation2 + $0xb8] sm:$0xff]
  %v452 = vld [vmem:[#allocation2 + $0xc0] sm:$0xff]
  %v453 = vld [vmem:[#allocation2 + $0xc8] sm:$0xff]
  %v454 = vld [vmem:[#allocation2 + $0xd0] sm:$0xff]
  %v455 = vld [vmem:[#allocation2 + $0xd8] sm:$0xff]
  %v456 = vld [vmem:[#allocation2 + $0xe0] sm:$0xff]
  %v457 = vld [vmem:[#allocation2 + $0xe8] sm:$0xff]
  %v458 = vld [vmem:[#allocation2 + $0xf0] sm:$0xff]
  %v459 = vld [vmem:[#allocation2 + $0xf8] sm:$0xff]
  %v492 = vunpack.c.l.b16 %v428
  %v493 = vunpack.c.h.b16 %v428
  %v494 = vunpack.c.l.b16 %v429
  %v495 = vunpack.c.h.b16 %v429
  %v496 = vunpack.c.l.b16 %v430
  %v497 = vunpack.c.h.b16 %v430
  %v498 = vunpack.c.l.b16 %v431
  %v499 = vunpack.c.h.b16 %v431
  %v500 = vunpack.c.l.b16 %v432
  %v501 = vunpack.c.h.b16 %v432
  %v502 = vunpack.c.l.b16 %v433
  %v503 = vunpack.c.h.b16 %v433
  %v504 = vunpack.c.l.b16 %v434
  %v505 = vunpack.c.h.b16 %v434
  %v506 = vunpack.c.l.b16 %v435
  %v507 = vunpack.c.h.b16 %v435
  %v508 = vunpack.c.l.b16 %v436
  %v509 = vunpack.c.h.b16 %v436
  %v510 = vunpack.c.l.b16 %v437
  %v511 = vunpack.c.h.b16 %v437
  %v512 = vunpack.c.l.b16 %v438
  %v513 = vunpack.c.h.b16 %v438
  %v514 = vunpack.c.l.b16 %v439
  %v515 = vunpack.c.h.b16 %v439
  %v516 = vunpack.c.l.b16 %v440
  %v517 = vunpack.c.h.b16 %v440
  %v518 = vunpack.c.l.b16 %v441
  %v519 = vunpack.c.h.b16 %v441
  %v520 = vunpack.c.l.b16 %v442
  %v521 = vunpack.c.h.b16 %v442
  %v522 = vunpack.c.l.b16 %v443
  %v523 = vunpack.c.h.b16 %v443
  %v524 = vunpack.c.l.b16 %v444
  %v525 = vunpack.c.h.b16 %v444
  %v526 = vunpack.c.l.b16 %v445
  %v527 = vunpack.c.h.b16 %v445
  %v528 = vunpack.c.l.b16 %v446
  %v529 = vunpack.c.h.b16 %v446
  %v530 = vunpack.c.l.b16 %v447
  %v531 = vunpack.c.h.b16 %v447
  %v532 = vunpack.c.l.b16 %v448
  %v533 = vunpack.c.h.b16 %v448
  %v534 = vunpack.c.l.b16 %v449
  %v535 = vunpack.c.h.b16 %v449
  %v536 = vunpack.c.l.b16 %v450
  %v537 = vunpack.c.h.b16 %v450
  %v538 = vunpack.c.l.b16 %v451
  %v539 = vunpack.c.h.b16 %v451
  %v540 = vunpack.c.l.b16 %v452
  %v541 = vunpack.c.h.b16 %v452
  %v542 = vunpack.c.l.b16 %v453
  %v543 = vunpack.c.h.b16 %v453
  %v544 = vunpack.c.l.b16 %v454
  %v545 = vunpack.c.h.b16 %v454
  %v546 = vunpack.c.l.b16 %v455
  %v547 = vunpack.c.h.b16 %v455
  %v548 = vunpack.c.l.b16 %v456
  %v549 = vunpack.c.h.b16 %v456
  %v550 = vunpack.c.l.b16 %v457
  %v551 = vunpack.c.h.b16 %v457
  %v552 = vunpack.c.l.b16 %v458
  %v553 = vunpack.c.h.b16 %v458
  %v554 = vunpack.c.l.b16 %v459
  %v555 = vunpack.c.h.b16 %v459
  %v556 = vpack.c.b16 %v496, %v492
  %v557 = vpack.c.b16 %v497, %v493
  %v558 = vpack.c.b16 %v498, %v494
  %v559 = vpack.c.b16 %v499, %v495
  %v560 = vpack.c.b16 %v504, %v500
  %v561 = vpack.c.b16 %v505, %v501
  %v562 = vpack.c.b16 %v506, %v502
  %v563 = vpack.c.b16 %v507, %v503
  %v564 = vpack.c.b16 %v512, %v508
  %v565 = vpack.c.b16 %v513, %v509
  %v566 = vpack.c.b16 %v514, %v510
  %v567 = vpack.c.b16 %v515, %v511
  %v568 = vpack.c.b16 %v520, %v516
  %v569 = vpack.c.b16 %v521, %v517
  %v570 = vpack.c.b16 %v522, %v518
  %v571 = vpack.c.b16 %v523, %v519
  %v572 = vpack.c.b16 %v528, %v524
  %v573 = vpack.c.b16 %v529, %v525
  %v574 = vpack.c.b16 %v530, %v526
  %v575 = vpack.c.b16 %v531, %v527
  %v576 = vpack.c.b16 %v536, %v532
  %v577 = vpack.c.b16 %v537, %v533
  %v578 = vpack.c.b16 %v538, %v534
  %v579 = vpack.c.b16 %v539, %v535
  %v580 = vpack.c.b16 %v544, %v540
  %v581 = vpack.c.b16 %v545, %v541
  %v582 = vpack.c.b16 %v546, %v542
  %v583 = vpack.c.b16 %v547, %v543
  %v584 = vpack.c.b16 %v552, %v548
  %v585 = vpack.c.b16 %v553, %v549
  %v586 = vpack.c.b16 %v554, %v550
  %v587 = vpack.c.b16 %v555, %v551
  %620 = vmatpush.bf16.msra.mxu0 %v584
  %621 = vmatpush.bf16.msra.mxu0 %v580
  %622 = vmatpush.bf16.msra.mxu0 %v576
  %623 = vmatpush.bf16.msra.mxu0 %v572
  %624 = vmatpush.bf16.msra.mxu0 %v568
  %625 = vmatpush.bf16.msra.mxu0 %v564
  %626 = vmatpush.bf16.msra.mxu0 %v560
  %627 = vmatpush.bf16.msra.mxu0 %v556
  %628 = vmatmul.bf16.gmra.mxu0 %v427
  %v629 = vpop.f32.mrf.mxu0
  %v630 = vadd.f32 0.0, %v629
  %v631 = vpop.f32.mrf.mxu0
  %632 = vdwg.mxu0
  %633 = vmatpush.bf16.msra.mxu0 %v585
  %634 = vmatpush.bf16.msra.mxu0 %v581
  %635 = vmatpush.bf16.msra.mxu0 %v577
  %636 = vmatpush.bf16.msra.mxu0 %v573
  %637 = vmatpush.bf16.msra.mxu0 %v569
  %638 = vmatpush.bf16.msra.mxu0 %v565
  %639 = vmatpush.bf16.msra.mxu0 %v561
  %640 = vmatpush.bf16.msra.mxu0 %v557
  %641 = vmatmul.bf16.gmra.mxu0 %v427
  %v642 = vpop.f32.mrf.mxu0
  %v643 = vadd.f32 0.0, %v642
  %v644 = vpop.f32.mrf.mxu0
  %645 = vdwg.mxu0
  %646 = vmatpush.bf16.msra.mxu0 %v586
  %647 = vmatpush.bf16.msra.mxu0 %v582
  %648 = vmatpush.bf16.msra.mxu0 %v578
  %649 = vmatpush.bf16.msra.mxu0 %v574
  %650 = vmatpush.bf16.msra.mxu0 %v570
  %651 = vmatpush.bf16.msra.mxu0 %v566
  %652 = vmatpush.bf16.msra.mxu0 %v562
  %653 = vmatpush.bf16.msra.mxu0 %v558
  %654 = vmatmul.bf16.gmra.mxu0 %v427
  %v655 = vpop.f32.mrf.mxu0
  %v656 = vadd.f32 0.0, %v655
  %v657 = vpop.f32.mrf.mxu0
  %658 = vdwg.mxu0
  %659 = vmatpush.bf16.msra.mxu0 %v587
  %660 = vmatpush.bf16.msra.mxu0 %v583
  %661 = vmatpush.bf16.msra.mxu0 %v579
  %662 = vmatpush.bf16.msra.mxu0 %v575
  %663 = vmatpush.bf16.msra.mxu0 %v571
  %664 = vmatpush.bf16.msra.mxu0 %v567
  %665 = vmatpush.bf16.msra.mxu0 %v563
  %666 = vmatpush.bf16.msra.mxu0 %v559
  %667 = vmatmul.bf16.gmra.mxu0 %v427
  %v668 = vpop.f32.mrf.mxu0
  %v669 = vadd.f32 0.0, %v668
  %v670 = vpop.f32.mrf.mxu0
  %671 = vdwg.mxu0
  %v672 = vadd.f32 %v423, %v630
  %v673 = vadd.f32 %v424, %v643
  %v674 = vadd.f32 %v425, %v656
  %v675 = vadd.f32 %v426, %v669
  %v676 = vxor.u32 %v672, 2147483648
  %v677 = vmul.f32 %v676, 1.442695
  %v678 = vpow.pop %v677
  %v679 = vadd.f32 %v678, 1.0
  %v680 = vrcp.pop %v679
  %v681 = vmul.f32 %v679, %v680
  %v682 = vsub.f32 1.0, %v681
  %v683 = vmul.f32 %v680, %v682
  %v684 = vadd.f32 %v680, %v683
  %vm685 = vweird.f32 %v679
  %vm686 = vweird.f32 %v680
  %vm687 = vmor %vm685, %vm686
  %v688 = vsel %vm687, %v680, %v684
  %v689 = vand.u32 2147483647, %v679
  %vm690 = vcmp.eq.f32.partialorder %v689, 8.507059e+37
  %v691 = vand.u32 %v679, 2147483648
  %v692 = vor.u32 1.1754944e-38, %v691
  %v693 = vsel %vm690, %v692, %v688
  %v694 = vmul.f32 1.0, %v693
  %v695 = vxor.u32 %v673, 2147483648
  %v696 = vmul.f32 %v695, 1.442695
  %v697 = vpow.pop %v696
  %v698 = vadd.f32 %v697, 1.0
  %v699 = vrcp.pop %v698
  %v700 = vmul.f32 %v698, %v699
  %v701 = vsub.f32 1.0, %v700
  %v702 = vmul.f32 %v699, %v701
  %v703 = vadd.f32 %v699, %v702
  %vm704 = vweird.f32 %v698
  %vm705 = vweird.f32 %v699
  %vm706 = vmor %vm704, %vm705
  %v707 = vsel %vm706, %v699, %v703
  %v708 = vand.u32 2147483647, %v698
  %vm709 = vcmp.eq.f32.partialorder %v708, 8.507059e+37
  %v710 = vand.u32 %v698, 2147483648
  %v711 = vor.u32 1.1754944e-38, %v710
  %v712 = vsel %vm709, %v711, %v707
  %v713 = vmul.f32 1.0, %v712
  %v714 = vtanh.pop %v674
  %v715 = vxor.u32 %v675, 2147483648
  %v716 = vmul.f32 %v715, 1.442695
  %v717 = vpow.pop %v716
  %v718 = vadd.f32 %v717, 1.0
  %v719 = vrcp.pop %v718
  %v720 = vmul.f32 %v718, %v719
  %v721 = vsub.f32 1.0, %v720
  %v722 = vmul.f32 %v719, %v721
  %v723 = vadd.f32 %v719, %v722
  %vm724 = vweird.f32 %v718
  %vm725 = vweird.f32 %v719
  %vm726 = vmor %vm724, %vm725
  %v727 = vsel %vm726, %v719, %v723
  %v728 = vand.u32 2147483647, %v718
  %vm729 = vcmp.eq.f32.partialorder %v728, 8.507059e+37
  %v730 = vand.u32 %v718, 2147483648
  %v731 = vor.u32 1.1754944e-38, %v730
  %v732 = vsel %vm729, %v731, %v727
  %v733 = vmul.f32 1.0, %v732
  %v734 = vmul.f32 %v713, %v416
  %v735 = vmul.f32 %v694, %v714
  %v736 = vadd.f32 %v734, %v735
  %v737 = vtanh.pop %v736
  %v738 = vmul.f32 %v733, %v737
  %s739 = scalar_lea.vmem %s2, 8
  %740 = vst [vmem:[%s739] sm:$0xff] %v738
  %s741 = scalar_lea.vmem %s0, 32
  %v742 = vld [vmem:[%s741] sm:$0xff]
  %v743 = vld [vmem:[%s741 + $0x8] sm:$0xff]
  %v744 = vunpack.c.l.bf16 %v742
  %v745 = vunpack.c.h.bf16 %v742
  %v746 = vunpack.c.l.bf16 %v743
  %v747 = vunpack.c.h.bf16 %v743
  %v748 = vpack.c.bf16 %v738, %v738
  %v749 = vld [vmem:[#allocation2] sm:$0xff]
  %v750 = vld [vmem:[#allocation2 + $0x8] sm:$0xff]
  %v751 = vld [vmem:[#allocation2 + $0x10] sm:$0xff]
  %v752 = vld [vmem:[#allocation2 + $0x18] sm:$0xff]
  %v753 = vld [vmem:[#allocation2 + $0x20] sm:$0xff]
  %v754 = vld [vmem:[#allocation2 + $0x28] sm:$0xff]
  %v755 = vld [vmem:[#allocation2 + $0x30] sm:$0xff]
  %v756 = vld [vmem:[#allocation2 + $0x38] sm:$0xff]
  %v757 = vld [vmem:[#allocation2 + $0x40] sm:$0xff]
  %v758 = vld [vmem:[#allocation2 + $0x48] sm:$0xff]
  %v759 = vld [vmem:[#allocation2 + $0x50] sm:$0xff]
  %v760 = vld [vmem:[#allocation2 + $0x58] sm:$0xff]
  %v761 = vld [vmem:[#allocation2 + $0x60] sm:$0xff]
  %v762 = vld [vmem:[#allocation2 + $0x68] sm:$0xff]
  %v763 = vld [vmem:[#allocation2 + $0x70] sm:$0xff]
  %v764 = vld [vmem:[#allocation2 + $0x78] sm:$0xff]
  %v765 = vld [vmem:[#allocation2 + $0x80] sm:$0xff]
  %v766 = vld [vmem:[#allocation2 + $0x88] sm:$0xff]
  %v767 = vld [vmem:[#allocation2 + $0x90] sm:$0xff]
  %v768 = vld [vmem:[#allocation2 + $0x98] sm:$0xff]
  %v769 = vld [vmem:[#allocation2 + $0xa0] sm:$0xff]
  %v770 = vld [vmem:[#allocation2 + $0xa8] sm:$0xff]
  %v771 = vld [vmem:[#allocation2 + $0xb0] sm:$0xff]
  %v772 = vld [vmem:[#allocation2 + $0xb8] sm:$0xff]
  %v773 = vld [vmem:[#allocation2 + $0xc0] sm:$0xff]
  %v774 = vld [vmem:[#allocation2 + $0xc8] sm:$0xff]
  %v775 = vld [vmem:[#allocation2 + $0xd0] sm:$0xff]
  %v776 = vld [vmem:[#allocation2 + $0xd8] sm:$0xff]
  %v777 = vld [vmem:[#allocation2 + $0xe0] sm:$0xff]
  %v778 = vld [vmem:[#allocation2 + $0xe8] sm:$0xff]
  %v779 = vld [vmem:[#allocation2 + $0xf0] sm:$0xff]
  %v780 = vld [vmem:[#allocation2 + $0xf8] sm:$0xff]
  %v813 = vunpack.c.l.b16 %v749
  %v814 = vunpack.c.h.b16 %v749
  %v815 = vunpack.c.l.b16 %v750
  %v816 = vunpack.c.h.b16 %v750
  %v817 = vunpack.c.l.b16 %v751
  %v818 = vunpack.c.h.b16 %v751
  %v819 = vunpack.c.l.b16 %v752
  %v820 = vunpack.c.h.b16 %v752
  %v821 = vunpack.c.l.b16 %v753
  %v822 = vunpack.c.h.b16 %v753
  %v823 = vunpack.c.l.b16 %v754
  %v824 = vunpack.c.h.b16 %v754
  %v825 = vunpack.c.l.b16 %v755
  %v826 = vunpack.c.h.b16 %v755
  %v827 = vunpack.c.l.b16 %v756
  %v828 = vunpack.c.h.b16 %v756
  %v829 = vunpack.c.l.b16 %v757
  %v830 = vunpack.c.h.b16 %v757
  %v831 = vunpack.c.l.b16 %v758
  %v832 = vunpack.c.h.b16 %v758
  %v833 = vunpack.c.l.b16 %v759
  %v834 = vunpack.c.h.b16 %v759
  %v835 = vunpack.c.l.b16 %v760
  %v836 = vunpack.c.h.b16 %v760
  %v837 = vunpack.c.l.b16 %v761
  %v838 = vunpack.c.h.b16 %v761
  %v839 = vunpack.c.l.b16 %v762
  %v840 = vunpack.c.h.b16 %v762
  %v841 = vunpack.c.l.b16 %v763
  %v842 = vunpack.c.h.b16 %v763
  %v843 = vunpack.c.l.b16 %v764
  %v844 = vunpack.c.h.b16 %v764
  %v845 = vunpack.c.l.b16 %v765
  %v846 = vunpack.c.h.b16 %v765
  %v847 = vunpack.c.l.b16 %v766
  %v848 = vunpack.c.h.b16 %v766
  %v849 = vunpack.c.l.b16 %v767
  %v850 = vunpack.c.h.b16 %v767
  %v851 = vunpack.c.l.b16 %v768
  %v852 = vunpack.c.h.b16 %v768
  %v853 = vunpack.c.l.b16 %v769
  %v854 = vunpack.c.h.b16 %v769
  %v855 = vunpack.c.l.b16 %v770
  %v856 = vunpack.c.h.b16 %v770
  %v857 = vunpack.c.l.b16 %v771
  %v858 = vunpack.c.h.b16 %v771
  %v859 = vunpack.c.l.b16 %v772
  %v860 = vunpack.c.h.b16 %v772
  %v861 = vunpack.c.l.b16 %v773
  %v862 = vunpack.c.h.b16 %v773
  %v863 = vunpack.c.l.b16 %v774
  %v864 = vunpack.c.h.b16 %v774
  %v865 = vunpack.c.l.b16 %v775
  %v866 = vunpack.c.h.b16 %v775
  %v867 = vunpack.c.l.b16 %v776
  %v868 = vunpack.c.h.b16 %v776
  %v869 = vunpack.c.l.b16 %v777
  %v870 = vunpack.c.h.b16 %v777
  %v871 = vunpack.c.l.b16 %v778
  %v872 = vunpack.c.h.b16 %v778
  %v873 = vunpack.c.l.b16 %v779
  %v874 = vunpack.c.h.b16 %v779
  %v875 = vunpack.c.l.b16 %v780
  %v876 = vunpack.c.h.b16 %v780
  %v877 = vpack.c.b16 %v817, %v813
  %v878 = vpack.c.b16 %v818, %v814
  %v879 = vpack.c.b16 %v819, %v815
  %v880 = vpack.c.b16 %v820, %v816
  %v881 = vpack.c.b16 %v825, %v821
  %v882 = vpack.c.b16 %v826, %v822
  %v883 = vpack.c.b16 %v827, %v823
  %v884 = vpack.c.b16 %v828, %v824
  %v885 = vpack.c.b16 %v833, %v829
  %v886 = vpack.c.b16 %v834, %v830
  %v887 = vpack.c.b16 %v835, %v831
  %v888 = vpack.c.b16 %v836, %v832
  %v889 = vpack.c.b16 %v841, %v837
  %v890 = vpack.c.b16 %v842, %v838
  %v891 = vpack.c.b16 %v843, %v839
  %v892 = vpack.c.b16 %v844, %v840
  %v893 = vpack.c.b16 %v849, %v845
  %v894 = vpack.c.b16 %v850, %v846
  %v895 = vpack.c.b16 %v851, %v847
  %v896 = vpack.c.b16 %v852, %v848
  %v897 = vpack.c.b16 %v857, %v853
  %v898 = vpack.c.b16 %v858, %v854
  %v899 = vpack.c.b16 %v859, %v855
  %v900 = vpack.c.b16 %v860, %v856
  %v901 = vpack.c.b16 %v865, %v861
  %v902 = vpack.c.b16 %v866, %v862
  %v903 = vpack.c.b16 %v867, %v863
  %v904 = vpack.c.b16 %v868, %v864
  %v905 = vpack.c.b16 %v873, %v869
  %v906 = vpack.c.b16 %v874, %v870
  %v907 = vpack.c.b16 %v875, %v871
  %v908 = vpack.c.b16 %v876, %v872
  %941 = vmatpush.bf16.msra.mxu0 %v905
  %942 = vmatpush.bf16.msra.mxu0 %v901
  %943 = vmatpush.bf16.msra.mxu0 %v897
  %944 = vmatpush.bf16.msra.mxu0 %v893
  %945 = vmatpush.bf16.msra.mxu0 %v889
  %946 = vmatpush.bf16.msra.mxu0 %v885
  %947 = vmatpush.bf16.msra.mxu0 %v881
  %948 = vmatpush.bf16.msra.mxu0 %v877
  %949 = vmatmul.bf16.gmra.mxu0 %v748
  %v950 = vpop.f32.mrf.mxu0
  %v951 = vadd.f32 0.0, %v950
  %v952 = vpop.f32.mrf.mxu0
  %953 = vdwg.mxu0
  %954 = vmatpush.bf16.msra.mxu0 %v906
  %955 = vmatpush.bf16.msra.mxu0 %v902
  %956 = vmatpush.bf16.msra.mxu0 %v898
  %957 = vmatpush.bf16.msra.mxu0 %v894
  %958 = vmatpush.bf16.msra.mxu0 %v890
  %959 = vmatpush.bf16.msra.mxu0 %v886
  %960 = vmatpush.bf16.msra.mxu0 %v882
  %961 = vmatpush.bf16.msra.mxu0 %v878
  %962 = vmatmul.bf16.gmra.mxu0 %v748
  %v963 = vpop.f32.mrf.mxu0
  %v964 = vadd.f32 0.0, %v963
  %v965 = vpop.f32.mrf.mxu0
  %966 = vdwg.mxu0
  %967 = vmatpush.bf16.msra.mxu0 %v907
  %968 = vmatpush.bf16.msra.mxu0 %v903
  %969 = vmatpush.bf16.msra.mxu0 %v899
  %970 = vmatpush.bf16.msra.mxu0 %v895
  %971 = vmatpush.bf16.msra.mxu0 %v891
  %972 = vmatpush.bf16.msra.mxu0 %v887
  %973 = vmatpush.bf16.msra.mxu0 %v883
  %974 = vmatpush.bf16.msra.mxu0 %v879
  %975 = vmatmul.bf16.gmra.mxu0 %v748
  %v976 = vpop.f32.mrf.mxu0
  %v977 = vadd.f32 0.0, %v976
  %v978 = vpop.f32.mrf.mxu0
  %979 = vdwg.mxu0
  %980 = vmatpush.bf16.msra.mxu0 %v908
  %981 = vmatpush.bf16.msra.mxu0 %v904
  %982 = vmatpush.bf16.msra.mxu0 %v900
  %983 = vmatpush.bf16.msra.mxu0 %v896
  %984 = vmatpush.bf16.msra.mxu0 %v892
  %985 = vmatpush.bf16.msra.mxu0 %v888
  %986 = vmatpush.bf16.msra.mxu0 %v884
  %987 = vmatpush.bf16.msra.mxu0 %v880
  %988 = vmatmul.bf16.gmra.mxu0 %v748
  %v989 = vpop.f32.mrf.mxu0
  %v990 = vadd.f32 0.0, %v989
  %v991 = vpop.f32.mrf.mxu0
  %992 = vdwg.mxu0
  %v993 = vadd.f32 %v744, %v951
  %v994 = vadd.f32 %v745, %v964
  %v995 = vadd.f32 %v746, %v977
  %v996 = vadd.f32 %v747, %v990
  %v997 = vxor.u32 %v993, 2147483648
  %v998 = vmul.f32 %v997, 1.442695
  %v999 = vpow.pop %v998
  %v1000 = vadd.f32 %v999, 1.0
  %v1001 = vrcp.pop %v1000
  %v1002 = vmul.f32 %v1000, %v1001
  %v1003 = vsub.f32 1.0, %v1002
  %v1004 = vmul.f32 %v1001, %v1003
  %v1005 = vadd.f32 %v1001, %v1004
  %vm1006 = vweird.f32 %v1000
  %vm1007 = vweird.f32 %v1001
  %vm1008 = vmor %vm1006, %vm1007
  %v1009 = vsel %vm1008, %v1001, %v1005
  %v1010 = vand.u32 2147483647, %v1000
  %vm1011 = vcmp.eq.f32.partialorder %v1010, 8.507059e+37
  %v1012 = vand.u32 %v1000, 2147483648
  %v1013 = vor.u32 1.1754944e-38, %v1012
  %v1014 = vsel %vm1011, %v1013, %v1009
  %v1015 = vmul.f32 1.0, %v1014
  %v1016 = vxor.u32 %v994, 2147483648
  %v1017 = vmul.f32 %v1016, 1.442695
  %v1018 = vpow.pop %v1017
  %v1019 = vadd.f32 %v1018, 1.0
  %v1020 = vrcp.pop %v1019
  %v1021 = vmul.f32 %v1019, %v1020
  %v1022 = vsub.f32 1.0, %v1021
  %v1023 = vmul.f32 %v1020, %v1022
  %v1024 = vadd.f32 %v1020, %v1023
  %vm1025 = vweird.f32 %v1019
  %vm1026 = vweird.f32 %v1020
  %vm1027 = vmor %vm1025, %vm1026
  %v1028 = vsel %vm1027, %v1020, %v1024
  %v1029 = vand.u32 2147483647, %v1019
  %vm1030 = vcmp.eq.f32.partialorder %v1029, 8.507059e+37
  %v1031 = vand.u32 %v1019, 2147483648
  %v1032 = vor.u32 1.1754944e-38, %v1031
  %v1033 = vsel %vm1030, %v1032, %v1028
  %v1034 = vmul.f32 1.0, %v1033
  %v1035 = vtanh.pop %v995
  %v1036 = vxor.u32 %v996, 2147483648
  %v1037 = vmul.f32 %v1036, 1.442695
  %v1038 = vpow.pop %v1037
  %v1039 = vadd.f32 %v1038, 1.0
  %v1040 = vrcp.pop %v1039
  %v1041 = vmul.f32 %v1039, %v1040
  %v1042 = vsub.f32 1.0, %v1041
  %v1043 = vmul.f32 %v1040, %v1042
  %v1044 = vadd.f32 %v1040, %v1043
  %vm1045 = vweird.f32 %v1039
  %vm1046 = vweird.f32 %v1040
  %vm1047 = vmor %vm1045, %vm1046
  %v1048 = vsel %vm1047, %v1040, %v1044
  %v1049 = vand.u32 2147483647, %v1039
  %vm1050 = vcmp.eq.f32.partialorder %v1049, 8.507059e+37
  %v1051 = vand.u32 %v1039, 2147483648
  %v1052 = vor.u32 1.1754944e-38, %v1051
  %v1053 = vsel %vm1050, %v1052, %v1048
  %v1054 = vmul.f32 1.0, %v1053
  %v1055 = vmul.f32 %v1034, %v736
  %v1056 = vmul.f32 %v1015, %v1035
  %v1057 = vadd.f32 %v1055, %v1056
  %v1058 = vtanh.pop %v1057
  %v1059 = vmul.f32 %v1054, %v1058
  %s1060 = scalar_lea.vmem %s2, 16
  %1061 = vst [vmem:[%s1060] sm:$0xff] %v1059
  %s1062 = scalar_lea.vmem %s0, 48
  %v1063 = vld [vmem:[%s1062] sm:$0xff]
  %v1064 = vld [vmem:[%s1062 + $0x8] sm:$0xff]
  %v1065 = vunpack.c.l.bf16 %v1063
  %v1066 = vunpack.c.h.bf16 %v1063
  %v1067 = vunpack.c.l.bf16 %v1064
  %v1068 = vunpack.c.h.bf16 %v1064
  %v1069 = vpack.c.bf16 %v1059, %v1059
  %v1070 = vld [vmem:[#allocation2] sm:$0xff]
  %v1071 = vld [vmem:[#allocation2 + $0x8] sm:$0xff]
  %v1072 = vld [vmem:[#allocation2 + $0x10] sm:$0xff]
  %v1073 = vld [vmem:[#allocation2 + $0x18] sm:$0xff]
  %v1074 = vld [vmem:[#allocation2 + $0x20] sm:$0xff]
  %v1075 = vld [vmem:[#allocation2 + $0x28] sm:$0xff]
  %v1076 = vld [vmem:[#allocation2 + $0x30] sm:$0xff]
  %v1077 = vld [vmem:[#allocation2 + $0x38] sm:$0xff]
  %v1078 = vld [vmem:[#allocation2 + $0x40] sm:$0xff]
  %v1079 = vld [vmem:[#allocation2 + $0x48] sm:$0xff]
  %v1080 = vld [vmem:[#allocation2 + $0x50] sm:$0xff]
  %v1081 = vld [vmem:[#allocation2 + $0x58] sm:$0xff]
  %v1082 = vld [vmem:[#allocation2 + $0x60] sm:$0xff]
  %v1083 = vld [vmem:[#allocation2 + $0x68] sm:$0xff]
  %v1084 = vld [vmem:[#allocation2 + $0x70] sm:$0xff]
  %v1085 = vld [vmem:[#allocation2 + $0x78] sm:$0xff]
  %v1086 = vld [vmem:[#allocation2 + $0x80] sm:$0xff]
  %v1087 = vld [vmem:[#allocation2 + $0x88] sm:$0xff]
  %v1088 = vld [vmem:[#allocation2 + $0x90] sm:$0xff]
  %v1089 = vld [vmem:[#allocation2 + $0x98] sm:$0xff]
  %v1090 = vld [vmem:[#allocation2 + $0xa0] sm:$0xff]
  %v1091 = vld [vmem:[#allocation2 + $0xa8] sm:$0xff]
  %v1092 = vld [vmem:[#allocation2 + $0xb0] sm:$0xff]
  %v1093 = vld [vmem:[#allocation2 + $0xb8] sm:$0xff]
  %v1094 = vld [vmem:[#allocation2 + $0xc0] sm:$0xff]
  %v1095 = vld [vmem:[#allocation2 + $0xc8] sm:$0xff]
  %v1096 = vld [vmem:[#allocation2 + $0xd0] sm:$0xff]
  %v1097 = vld [vmem:[#allocation2 + $0xd8] sm:$0xff]
  %v1098 = vld [vmem:[#allocation2 + $0xe0] sm:$0xff]
  %v1099 = vld [vmem:[#allocation2 + $0xe8] sm:$0xff]
  %v1100 = vld [vmem:[#allocation2 + $0xf0] sm:$0xff]
  %v1101 = vld [vmem:[#allocation2 + $0xf8] sm:$0xff]
  %v1134 = vunpack.c.l.b16 %v1070
  %v1135 = vunpack.c.h.b16 %v1070
  %v1136 = vunpack.c.l.b16 %v1071
  %v1137 = vunpack.c.h.b16 %v1071
  %v1138 = vunpack.c.l.b16 %v1072
  %v1139 = vunpack.c.h.b16 %v1072
  %v1140 = vunpack.c.l.b16 %v1073
  %v1141 = vunpack.c.h.b16 %v1073
  %v1142 = vunpack.c.l.b16 %v1074
  %v1143 = vunpack.c.h.b16 %v1074
  %v1144 = vunpack.c.l.b16 %v1075
  %v1145 = vunpack.c.h.b16 %v1075
  %v1146 = vunpack.c.l.b16 %v1076
  %v1147 = vunpack.c.h.b16 %v1076
  %v1148 = vunpack.c.l.b16 %v1077
  %v1149 = vunpack.c.h.b16 %v1077
  %v1150 = vunpack.c.l.b16 %v1078
  %v1151 = vunpack.c.h.b16 %v1078
  %v1152 = vunpack.c.l.b16 %v1079
  %v1153 = vunpack.c.h.b16 %v1079
  %v1154 = vunpack.c.l.b16 %v1080
  %v1155 = vunpack.c.h.b16 %v1080
  %v1156 = vunpack.c.l.b16 %v1081
  %v1157 = vunpack.c.h.b16 %v1081
  %v1158 = vunpack.c.l.b16 %v1082
  %v1159 = vunpack.c.h.b16 %v1082
  %v1160 = vunpack.c.l.b16 %v1083
  %v1161 = vunpack.c.h.b16 %v1083
  %v1162 = vunpack.c.l.b16 %v1084
  %v1163 = vunpack.c.h.b16 %v1084
  %v1164 = vunpack.c.l.b16 %v1085
  %v1165 = vunpack.c.h.b16 %v1085
  %v1166 = vunpack.c.l.b16 %v1086
  %v1167 = vunpack.c.h.b16 %v1086
  %v1168 = vunpack.c.l.b16 %v1087
  %v1169 = vunpack.c.h.b16 %v1087
  %v1170 = vunpack.c.l.b16 %v1088
  %v1171 = vunpack.c.h.b16 %v1088
  %v1172 = vunpack.c.l.b16 %v1089
  %v1173 = vunpack.c.h.b16 %v1089
  %v1174 = vunpack.c.l.b16 %v1090
  %v1175 = vunpack.c.h.b16 %v1090
  %v1176 = vunpack.c.l.b16 %v1091
  %v1177 = vunpack.c.h.b16 %v1091
  %v1178 = vunpack.c.l.b16 %v1092
  %v1179 = vunpack.c.h.b16 %v1092
  %v1180 = vunpack.c.l.b16 %v1093
  %v1181 = vunpack.c.h.b16 %v1093
  %v1182 = vunpack.c.l.b16 %v1094
  %v1183 = vunpack.c.h.b16 %v1094
  %v1184 = vunpack.c.l.b16 %v1095
  %v1185 = vunpack.c.h.b16 %v1095
  %v1186 = vunpack.c.l.b16 %v1096
  %v1187 = vunpack.c.h.b16 %v1096
  %v1188 = vunpack.c.l.b16 %v1097
  %v1189 = vunpack.c.h.b16 %v1097
  %v1190 = vunpack.c.l.b16 %v1098
  %v1191 = vunpack.c.h.b16 %v1098
  %v1192 = vunpack.c.l.b16 %v1099
  %v1193 = vunpack.c.h.b16 %v1099
  %v1194 = vunpack.c.l.b16 %v1100
  %v1195 = vunpack.c.h.b16 %v1100
  %v1196 = vunpack.c.l.b16 %v1101
  %v1197 = vunpack.c.h.b16 %v1101
  %v1198 = vpack.c.b16 %v1138, %v1134
  %v1199 = vpack.c.b16 %v1139, %v1135
  %v1200 = vpack.c.b16 %v1140, %v1136
  %v1201 = vpack.c.b16 %v1141, %v1137
  %v1202 = vpack.c.b16 %v1146, %v1142
  %v1203 = vpack.c.b16 %v1147, %v1143
  %v1204 = vpack.c.b16 %v1148, %v1144
  %v1205 = vpack.c.b16 %v1149, %v1145
  %v1206 = vpack.c.b16 %v1154, %v1150
  %v1207 = vpack.c.b16 %v1155, %v1151
  %v1208 = vpack.c.b16 %v1156, %v1152
  %v1209 = vpack.c.b16 %v1157, %v1153
  %v1210 = vpack.c.b16 %v1162, %v1158
  %v1211 = vpack.c.b16 %v1163, %v1159
  %v1212 = vpack.c.b16 %v1164, %v1160
  %v1213 = vpack.c.b16 %v1165, %v1161
  %v1214 = vpack.c.b16 %v1170, %v1166
  %v1215 = vpack.c.b16 %v1171, %v1167
  %v1216 = vpack.c.b16 %v1172, %v1168
  %v1217 = vpack.c.b16 %v1173, %v1169
  %v1218 = vpack.c.b16 %v1178, %v1174
  %v1219 = vpack.c.b16 %v1179, %v1175
  %v1220 = vpack.c.b16 %v1180, %v1176
  %v1221 = vpack.c.b16 %v1181, %v1177
  %v1222 = vpack.c.b16 %v1186, %v1182
  %v1223 = vpack.c.b16 %v1187, %v1183
  %v1224 = vpack.c.b16 %v1188, %v1184
  %v1225 = vpack.c.b16 %v1189, %v1185
  %v1226 = vpack.c.b16 %v1194, %v1190
  %v1227 = vpack.c.b16 %v1195, %v1191
  %v1228 = vpack.c.b16 %v1196, %v1192
  %v1229 = vpack.c.b16 %v1197, %v1193
  %1262 = vmatpush.bf16.msra.mxu0 %v1226
  %1263 = vmatpush.bf16.msra.mxu0 %v1222
  %1264 = vmatpush.bf16.msra.mxu0 %v1218
  %1265 = vmatpush.bf16.msra.mxu0 %v1214
  %1266 = vmatpush.bf16.msra.mxu0 %v1210
  %1267 = vmatpush.bf16.msra.mxu0 %v1206
  %1268 = vmatpush.bf16.msra.mxu0 %v1202
  %1269 = vmatpush.bf16.msra.mxu0 %v1198
  %1270 = vmatmul.bf16.gmra.mxu0 %v1069
  %v1271 = vpop.f32.mrf.mxu0
  %v1272 = vadd.f32 0.0, %v1271
  %v1273 = vpop.f32.mrf.mxu0
  %1274 = vdwg.mxu0
  %1275 = vmatpush.bf16.msra.mxu0 %v1227
  %1276 = vmatpush.bf16.msra.mxu0 %v1223
  %1277 = vmatpush.bf16.msra.mxu0 %v1219
  %1278 = vmatpush.bf16.msra.mxu0 %v1215
  %1279 = vmatpush.bf16.msra.mxu0 %v1211
  %1280 = vmatpush.bf16.msra.mxu0 %v1207
  %1281 = vmatpush.bf16.msra.mxu0 %v1203
  %1282 = vmatpush.bf16.msra.mxu0 %v1199
  %1283 = vmatmul.bf16.gmra.mxu0 %v1069
  %v1284 = vpop.f32.mrf.mxu0
  %v1285 = vadd.f32 0.0, %v1284
  %v1286 = vpop.f32.mrf.mxu0
  %1287 = vdwg.mxu0
  %1288 = vmatpush.bf16.msra.mxu0 %v1228
  %1289 = vmatpush.bf16.msra.mxu0 %v1224
  %1290 = vmatpush.bf16.msra.mxu0 %v1220
  %1291 = vmatpush.bf16.msra.mxu0 %v1216
  %1292 = vmatpush.bf16.msra.mxu0 %v1212
  %1293 = vmatpush.bf16.msra.mxu0 %v1208
  %1294 = vmatpush.bf16.msra.mxu0 %v1204
  %1295 = vmatpush.bf16.msra.mxu0 %v1200
  %1296 = vmatmul.bf16.gmra.mxu0 %v1069
  %v1297 = vpop.f32.mrf.mxu0
  %v1298 = vadd.f32 0.0, %v1297
  %v1299 = vpop.f32.mrf.mxu0
  %1300 = vdwg.mxu0
  %1301 = vmatpush.bf16.msra.mxu0 %v1229
  %1302 = vmatpush.bf16.msra.mxu0 %v1225
  %1303 = vmatpush.bf16.msra.mxu0 %v1221
  %1304 = vmatpush.bf16.msra.mxu0 %v1217
  %1305 = vmatpush.bf16.msra.mxu0 %v1213
  %1306 = vmatpush.bf16.msra.mxu0 %v1209
  %1307 = vmatpush.bf16.msra.mxu0 %v1205
  %1308 = vmatpush.bf16.msra.mxu0 %v1201
  %1309 = vmatmul.bf16.gmra.mxu0 %v1069
  %v1310 = vpop.f32.mrf.mxu0
  %v1311 = vadd.f32 0.0, %v1310
  %v1312 = vpop.f32.mrf.mxu0
  %1313 = vdwg.mxu0
  %v1314 = vadd.f32 %v1065, %v1272
  %v1315 = vadd.f32 %v1066, %v1285
  %v1316 = vadd.f32 %v1067, %v1298
  %v1317 = vadd.f32 %v1068, %v1311
  %v1318 = vxor.u32 %v1314, 2147483648
  %v1319 = vmul.f32 %v1318, 1.442695
  %v1320 = vpow.pop %v1319
  %v1321 = vadd.f32 %v1320, 1.0
  %v1322 = vrcp.pop %v1321
  %v1323 = vmul.f32 %v1321, %v1322
  %v1324 = vsub.f32 1.0, %v1323
  %v1325 = vmul.f32 %v1322, %v1324
  %v1326 = vadd.f32 %v1322, %v1325
  %vm1327 = vweird.f32 %v1321
  %vm1328 = vweird.f32 %v1322
  %vm1329 = vmor %vm1327, %vm1328
  %v1330 = vsel %vm1329, %v1322, %v1326
  %v1331 = vand.u32 2147483647, %v1321
  %vm1332 = vcmp.eq.f32.partialorder %v1331, 8.507059e+37
  %v1333 = vand.u32 %v1321, 2147483648
  %v1334 = vor.u32 1.1754944e-38, %v1333
  %v1335 = vsel %vm1332, %v1334, %v1330
  %v1336 = vmul.f32 1.0, %v1335
  %v1337 = vxor.u32 %v1315, 2147483648
  %v1338 = vmul.f32 %v1337, 1.442695
  %v1339 = vpow.pop %v1338
  %v1340 = vadd.f32 %v1339, 1.0
  %v1341 = vrcp.pop %v1340
  %v1342 = vmul.f32 %v1340, %v1341
  %v1343 = vsub.f32 1.0, %v1342
  %v1344 = vmul.f32 %v1341, %v1343
  %v1345 = vadd.f32 %v1341, %v1344
  %vm1346 = vweird.f32 %v1340
  %vm1347 = vweird.f32 %v1341
  %vm1348 = vmor %vm1346, %vm1347
  %v1349 = vsel %vm1348, %v1341, %v1345
  %v1350 = vand.u32 2147483647, %v1340
  %vm1351 = vcmp.eq.f32.partialorder %v1350, 8.507059e+37
  %v1352 = vand.u32 %v1340, 2147483648
  %v1353 = vor.u32 1.1754944e-38, %v1352
  %v1354 = vsel %vm1351, %v1353, %v1349
  %v1355 = vmul.f32 1.0, %v1354
  %v1356 = vtanh.pop %v1316
  %v1357 = vxor.u32 %v1317, 2147483648
  %v1358 = vmul.f32 %v1357, 1.442695
  %v1359 = vpow.pop %v1358
  %v1360 = vadd.f32 %v1359, 1.0
  %v1361 = vrcp.pop %v1360
  %v1362 = vmul.f32 %v1360, %v1361
  %v1363 = vsub.f32 1.0, %v1362
  %v1364 = vmul.f32 %v1361, %v1363
  %v1365 = vadd.f32 %v1361, %v1364
  %vm1366 = vweird.f32 %v1360
  %vm1367 = vweird.f32 %v1361
  %vm1368 = vmor %vm1366, %vm1367
  %v1369 = vsel %vm1368, %v1361, %v1365
  %v1370 = vand.u32 2147483647, %v1360
  %vm1371 = vcmp.eq.f32.partialorder %v1370, 8.507059e+37
  %v1372 = vand.u32 %v1360, 2147483648
  %v1373 = vor.u32 1.1754944e-38, %v1372
  %v1374 = vsel %vm1371, %v1373, %v1369
  %v1375 = vmul.f32 1.0, %v1374
  %v1376 = vmul.f32 %v1355, %v1057
  %v1377 = vmul.f32 %v1336, %v1356
  %v1378 = vadd.f32 %v1376, %v1377
  %v1379 = vtanh.pop %v1378
  %v1380 = vmul.f32 %v1375, %v1379
  %s1381 = scalar_lea.vmem %s2, 24
  %1382 = vst [vmem:[%s1381] sm:$0xff] %v1380
  %s1383 = scalar_lea.vmem %s0, 64
  %v1384 = vld [vmem:[%s1383] sm:$0xff]
  %v1385 = vld [vmem:[%s1383 + $0x8] sm:$0xff]
  %v1386 = vunpack.c.l.bf16 %v1384
  %v1387 = vunpack.c.h.bf16 %v1384
  %v1388 = vunpack.c.l.bf16 %v1385
  %v1389 = vunpack.c.h.bf16 %v1385
  %v1390 = vpack.c.bf16 %v1380, %v1380
  %v1391 = vld [vmem:[#allocation2] sm:$0xff]
  %v1392 = vld [vmem:[#allocation2 + $0x8] sm:$0xff]
  %v1393 = vld [vmem:[#allocation2 + $0x10] sm:$0xff]
  %v1394 = vld [vmem:[#allocation2 + $0x18] sm:$0xff]
  %v1395 = vld [vmem:[#allocation2 + $0x20] sm:$0xff]
  %v1396 = vld [vmem:[#allocation2 + $0x28] sm:$0xff]
  %v1397 = vld [vmem:[#allocation2 + $0x30] sm:$0xff]
  %v1398 = vld [vmem:[#allocation2 + $0x38] sm:$0xff]
  %v1399 = vld [vmem:[#allocation2 + $0x40] sm:$0xff]
  %v1400 = vld [vmem:[#allocation2 + $0x48] sm:$0xff]
  %v1401 = vld [vmem:[#allocation2 + $0x50] sm:$0xff]
  %v1402 = vld [vmem:[#allocation2 + $0x58] sm:$0xff]
  %v1403 = vld [vmem:[#allocation2 + $0x60] sm:$0xff]
  %v1404 = vld [vmem:[#allocation2 + $0x68] sm:$0xff]
  %v1405 = vld [vmem:[#allocation2 + $0x70] sm:$0xff]
  %v1406 = vld [vmem:[#allocation2 + $0x78] sm:$0xff]
  %v1407 = vld [vmem:[#allocation2 + $0x80] sm:$0xff]
  %v1408 = vld [vmem:[#allocation2 + $0x88] sm:$0xff]
  %v1409 = vld [vmem:[#allocation2 + $0x90] sm:$0xff]
  %v1410 = vld [vmem:[#allocation2 + $0x98] sm:$0xff]
  %v1411 = vld [vmem:[#allocation2 + $0xa0] sm:$0xff]
  %v1412 = vld [vmem:[#allocation2 + $0xa8] sm:$0xff]
  %v1413 = vld [vmem:[#allocation2 + $0xb0] sm:$0xff]
  %v1414 = vld [vmem:[#allocation2 + $0xb8] sm:$0xff]
  %v1415 = vld [vmem:[#allocation2 + $0xc0] sm:$0xff]
  %v1416 = vld [vmem:[#allocation2 + $0xc8] sm:$0xff]
  %v1417 = vld [vmem:[#allocation2 + $0xd0] sm:$0xff]
  %v1418 = vld [vmem:[#allocation2 + $0xd8] sm:$0xff]
  %v1419 = vld [vmem:[#allocation2 + $0xe0] sm:$0xff]
  %v1420 = vld [vmem:[#allocation2 + $0xe8] sm:$0xff]
  %v1421 = vld [vmem:[#allocation2 + $0xf0] sm:$0xff]
  %v1422 = vld [vmem:[#allocation2 + $0xf8] sm:$0xff]
  %v1455 = vunpack.c.l.b16 %v1391
  %v1456 = vunpack.c.h.b16 %v1391
  %v1457 = vunpack.c.l.b16 %v1392
  %v1458 = vunpack.c.h.b16 %v1392
  %v1459 = vunpack.c.l.b16 %v1393
  %v1460 = vunpack.c.h.b16 %v1393
  %v1461 = vunpack.c.l.b16 %v1394
  %v1462 = vunpack.c.h.b16 %v1394
  %v1463 = vunpack.c.l.b16 %v1395
  %v1464 = vunpack.c.h.b16 %v1395
  %v1465 = vunpack.c.l.b16 %v1396
  %v1466 = vunpack.c.h.b16 %v1396
  %v1467 = vunpack.c.l.b16 %v1397
  %v1468 = vunpack.c.h.b16 %v1397
  %v1469 = vunpack.c.l.b16 %v1398
  %v1470 = vunpack.c.h.b16 %v1398
  %v1471 = vunpack.c.l.b16 %v1399
  %v1472 = vunpack.c.h.b16 %v1399
  %v1473 = vunpack.c.l.b16 %v1400
  %v1474 = vunpack.c.h.b16 %v1400
  %v1475 = vunpack.c.l.b16 %v1401
  %v1476 = vunpack.c.h.b16 %v1401
  %v1477 = vunpack.c.l.b16 %v1402
  %v1478 = vunpack.c.h.b16 %v1402
  %v1479 = vunpack.c.l.b16 %v1403
  %v1480 = vunpack.c.h.b16 %v1403
  %v1481 = vunpack.c.l.b16 %v1404
  %v1482 = vunpack.c.h.b16 %v1404
  %v1483 = vunpack.c.l.b16 %v1405
  %v1484 = vunpack.c.h.b16 %v1405
  %v1485 = vunpack.c.l.b16 %v1406
  %v1486 = vunpack.c.h.b16 %v1406
  %v1487 = vunpack.c.l.b16 %v1407
  %v1488 = vunpack.c.h.b16 %v1407
  %v1489 = vunpack.c.l.b16 %v1408
  %v1490 = vunpack.c.h.b16 %v1408
  %v1491 = vunpack.c.l.b16 %v1409
  %v1492 = vunpack.c.h.b16 %v1409
  %v1493 = vunpack.c.l.b16 %v1410
  %v1494 = vunpack.c.h.b16 %v1410
  %v1495 = vunpack.c.l.b16 %v1411
  %v1496 = vunpack.c.h.b16 %v1411
  %v1497 = vunpack.c.l.b16 %v1412
  %v1498 = vunpack.c.h.b16 %v1412
  %v1499 = vunpack.c.l.b16 %v1413
  %v1500 = vunpack.c.h.b16 %v1413
  %v1501 = vunpack.c.l.b16 %v1414
  %v1502 = vunpack.c.h.b16 %v1414
  %v1503 = vunpack.c.l.b16 %v1415
  %v1504 = vunpack.c.h.b16 %v1415
  %v1505 = vunpack.c.l.b16 %v1416
  %v1506 = vunpack.c.h.b16 %v1416
  %v1507 = vunpack.c.l.b16 %v1417
  %v1508 = vunpack.c.h.b16 %v1417
  %v1509 = vunpack.c.l.b16 %v1418
  %v1510 = vunpack.c.h.b16 %v1418
  %v1511 = vunpack.c.l.b16 %v1419
  %v1512 = vunpack.c.h.b16 %v1419
  %v1513 = vunpack.c.l.b16 %v1420
  %v1514 = vunpack.c.h.b16 %v1420
  %v1515 = vunpack.c.l.b16 %v1421
  %v1516 = vunpack.c.h.b16 %v1421
  %v1517 = vunpack.c.l.b16 %v1422
  %v1518 = vunpack.c.h.b16 %v1422
  %v1519 = vpack.c.b16 %v1459, %v1455
  %v1520 = vpack.c.b16 %v1460, %v1456
  %v1521 = vpack.c.b16 %v1461, %v1457
  %v1522 = vpack.c.b16 %v1462, %v1458
  %v1523 = vpack.c.b16 %v1467, %v1463
  %v1524 = vpack.c.b16 %v1468, %v1464
  %v1525 = vpack.c.b16 %v1469, %v1465
  %v1526 = vpack.c.b16 %v1470, %v1466
  %v1527 = vpack.c.b16 %v1475, %v1471
  %v1528 = vpack.c.b16 %v1476, %v1472
  %v1529 = vpack.c.b16 %v1477, %v1473
  %v1530 = vpack.c.b16 %v1478, %v1474
  %v1531 = vpack.c.b16 %v1483, %v1479
  %v1532 = vpack.c.b16 %v1484, %v1480
  %v1533 = vpack.c.b16 %v1485, %v1481
  %v1534 = vpack.c.b16 %v1486, %v1482
  %v1535 = vpack.c.b16 %v1491, %v1487
  %v1536 = vpack.c.b16 %v1492, %v1488
  %v1537 = vpack.c.b16 %v1493, %v1489
  %v1538 = vpack.c.b16 %v1494, %v1490
  %v1539 = vpack.c.b16 %v1499, %v1495
  %v1540 = vpack.c.b16 %v1500, %v1496
  %v1541 = vpack.c.b16 %v1501, %v1497
  %v1542 = vpack.c.b16 %v1502, %v1498
  %v1543 = vpack.c.b16 %v1507, %v1503
  %v1544 = vpack.c.b16 %v1508, %v1504
  %v1545 = vpack.c.b16 %v1509, %v1505
  %v1546 = vpack.c.b16 %v1510, %v1506
  %v1547 = vpack.c.b16 %v1515, %v1511
  %v1548 = vpack.c.b16 %v1516, %v1512
  %v1549 = vpack.c.b16 %v1517, %v1513
  %v1550 = vpack.c.b16 %v1518, %v1514
  %1583 = vmatpush.bf16.msra.mxu0 %v1547
  %1584 = vmatpush.bf16.msra.mxu0 %v1543
  %1585 = vmatpush.bf16.msra.mxu0 %v1539
  %1586 = vmatpush.bf16.msra.mxu0 %v1535
  %1587 = vmatpush.bf16.msra.mxu0 %v1531
  %1588 = vmatpush.bf16.msra.mxu0 %v1527
  %1589 = vmatpush.bf16.msra.mxu0 %v1523
  %1590 = vmatpush.bf16.msra.mxu0 %v1519
  %1591 = vmatmul.bf16.gmra.mxu0 %v1390
  %v1592 = vpop.f32.mrf.mxu0
  %v1593 = vadd.f32 0.0, %v1592
  %v1594 = vpop.f32.mrf.mxu0
  %1595 = vdwg.mxu0
  %1596 = vmatpush.bf16.msra.mxu0 %v1548
  %1597 = vmatpush.bf16.msra.mxu0 %v1544
  %1598 = vmatpush.bf16.msra.mxu0 %v1540
  %1599 = vmatpush.bf16.msra.mxu0 %v1536
  %1600 = vmatpush.bf16.msra.mxu0 %v1532
  %1601 = vmatpush.bf16.msra.mxu0 %v1528
  %1602 = vmatpush.bf16.msra.mxu0 %v1524
  %1603 = vmatpush.bf16.msra.mxu0 %v1520
  %1604 = vmatmul.bf16.gmra.mxu0 %v1390
  %v1605 = vpop.f32.mrf.mxu0
  %v1606 = vadd.f32 0.0, %v1605
  %v1607 = vpop.f32.mrf.mxu0
  %1608 = vdwg.mxu0
  %1609 = vmatpush.bf16.msra.mxu0 %v1549
  %1610 = vmatpush.bf16.msra.mxu0 %v1545
  %1611 = vmatpush.bf16.msra.mxu0 %v1541
  %1612 = vmatpush.bf16.msra.mxu0 %v1537
  %1613 = vmatpush.bf16.msra.mxu0 %v1533
  %1614 = vmatpush.bf16.msra.mxu0 %v1529
  %1615 = vmatpush.bf16.msra.mxu0 %v1525
  %1616 = vmatpush.bf16.msra.mxu0 %v1521
  %1617 = vmatmul.bf16.gmra.mxu0 %v1390
  %v1618 = vpop.f32.mrf.mxu0
  %v1619 = vadd.f32 0.0, %v1618
  %v1620 = vpop.f32.mrf.mxu0
  %1621 = vdwg.mxu0
  %1622 = vmatpush.bf16.msra.mxu0 %v1550
  %1623 = vmatpush.bf16.msra.mxu0 %v1546
  %1624 = vmatpush.bf16.msra.mxu0 %v1542
  %1625 = vmatpush.bf16.msra.mxu0 %v1538
  %1626 = vmatpush.bf16.msra.mxu0 %v1534
  %1627 = vmatpush.bf16.msra.mxu0 %v1530
  %1628 = vmatpush.bf16.msra.mxu0 %v1526
  %1629 = vmatpush.bf16.msra.mxu0 %v1522
  %1630 = vmatmul.bf16.gmra.mxu0 %v1390
  %v1631 = vpop.f32.mrf.mxu0
  %v1632 = vadd.f32 0.0, %v1631
  %v1633 = vpop.f32.mrf.mxu0
  %1634 = vdwg.mxu0
  %v1635 = vadd.f32 %v1386, %v1593
  %v1636 = vadd.f32 %v1387, %v1606
  %v1637 = vadd.f32 %v1388, %v1619
  %v1638 = vadd.f32 %v1389, %v1632
  %v1639 = vxor.u32 %v1635, 2147483648
  %v1640 = vmul.f32 %v1639, 1.442695
  %v1641 = vpow.pop %v1640
  %v1642 = vadd.f32 %v1641, 1.0
  %v1643 = vrcp.pop %v1642
  %v1644 = vmul.f32 %v1642, %v1643
  %v1645 = vsub.f32 1.0, %v1644
  %v1646 = vmul.f32 %v1643, %v1645
  %v1647 = vadd.f32 %v1643, %v1646
  %vm1648 = vweird.f32 %v1642
  %vm1649 = vweird.f32 %v1643
  %vm1650 = vmor %vm1648, %vm1649
  %v1651 = vsel %vm1650, %v1643, %v1647
  %v1652 = vand.u32 2147483647, %v1642
  %vm1653 = vcmp.eq.f32.partialorder %v1652, 8.507059e+37
  %v1654 = vand.u32 %v1642, 2147483648
  %v1655 = vor.u32 1.1754944e-38, %v1654
  %v1656 = vsel %vm1653, %v1655, %v1651
  %v1657 = vmul.f32 1.0, %v1656
  %v1658 = vxor.u32 %v1636, 2147483648
  %v1659 = vmul.f32 %v1658, 1.442695
  %v1660 = vpow.pop %v1659
  %v1661 = vadd.f32 %v1660, 1.0
  %v1662 = vrcp.pop %v1661
  %v1663 = vmul.f32 %v1661, %v1662
  %v1664 = vsub.f32 1.0, %v1663
  %v1665 = vmul.f32 %v1662, %v1664
  %v1666 = vadd.f32 %v1662, %v1665
  %vm1667 = vweird.f32 %v1661
  %vm1668 = vweird.f32 %v1662
  %vm1669 = vmor %vm1667, %vm1668
  %v1670 = vsel %vm1669, %v1662, %v1666
  %v1671 = vand.u32 2147483647, %v1661
  %vm1672 = vcmp.eq.f32.partialorder %v1671, 8.507059e+37
  %v1673 = vand.u32 %v1661, 2147483648
  %v1674 = vor.u32 1.1754944e-38, %v1673
  %v1675 = vsel %vm1672, %v1674, %v1670
  %v1676 = vmul.f32 1.0, %v1675
  %v1677 = vtanh.pop %v1637
  %v1678 = vxor.u32 %v1638, 2147483648
  %v1679 = vmul.f32 %v1678, 1.442695
  %v1680 = vpow.pop %v1679
  %v1681 = vadd.f32 %v1680, 1.0
  %v1682 = vrcp.pop %v1681
  %v1683 = vmul.f32 %v1681, %v1682
  %v1684 = vsub.f32 1.0, %v1683
  %v1685 = vmul.f32 %v1682, %v1684
  %v1686 = vadd.f32 %v1682, %v1685
  %vm1687 = vweird.f32 %v1681
  %vm1688 = vweird.f32 %v1682
  %vm1689 = vmor %vm1687, %vm1688
  %v1690 = vsel %vm1689, %v1682, %v1686
  %v1691 = vand.u32 2147483647, %v1681
  %vm1692 = vcmp.eq.f32.partialorder %v1691, 8.507059e+37
  %v1693 = vand.u32 %v1681, 2147483648
  %v1694 = vor.u32 1.1754944e-38, %v1693
  %v1695 = vsel %vm1692, %v1694, %v1690
  %v1696 = vmul.f32 1.0, %v1695
  %v1697 = vmul.f32 %v1676, %v1378
  %v1698 = vmul.f32 %v1657, %v1677
  %v1699 = vadd.f32 %v1697, %v1698
  %v1700 = vtanh.pop %v1699
  %v1701 = vmul.f32 %v1696, %v1700
  %s1702 = scalar_lea.vmem %s2, 32
  %1703 = vst [vmem:[%s1702] sm:$0xff] %v1701
  %s1704 = scalar_lea.vmem %s0, 80
  %v1705 = vld [vmem:[%s1704] sm:$0xff]
  %v1706 = vld [vmem:[%s1704 + $0x8] sm:$0xff]
  %v1707 = vunpack.c.l.bf16 %v1705
  %v1708 = vunpack.c.h.bf16 %v1705
  %v1709 = vunpack.c.l.bf16 %v1706
  %v1710 = vunpack.c.h.bf16 %v1706
  %v1711 = vpack.c.bf16 %v1701, %v1701
  %v1712 = vld [vmem:[#allocation2] sm:$0xff]
  %v1713 = vld [vmem:[#allocation2 + $0x8] sm:$0xff]
  %v1714 = vld [vmem:[#allocation2 + $0x10] sm:$0xff]
  %v1715 = vld [vmem:[#allocation2 + $0x18] sm:$0xff]
  %v1716 = vld [vmem:[#allocation2 + $0x20] sm:$0xff]
  %v1717 = vld [vmem:[#allocation2 + $0x28] sm:$0xff]
  %v1718 = vld [vmem:[#allocation2 + $0x30] sm:$0xff]
  %v1719 = vld [vmem:[#allocation2 + $0x38] sm:$0xff]
  %v1720 = vld [vmem:[#allocation2 + $0x40] sm:$0xff]
  %v1721 = vld [vmem:[#allocation2 + $0x48] sm:$0xff]
  %v1722 = vld [vmem:[#allocation2 + $0x50] sm:$0xff]
  %v1723 = vld [vmem:[#allocation2 + $0x58] sm:$0xff]
  %v1724 = vld [vmem:[#allocation2 + $0x60] sm:$0xff]
  %v1725 = vld [vmem:[#allocation2 + $0x68] sm:$0xff]
  %v1726 = vld [vmem:[#allocation2 + $0x70] sm:$0xff]
  %v1727 = vld [vmem:[#allocation2 + $0x78] sm:$0xff]
  %v1728 = vld [vmem:[#allocation2 + $0x80] sm:$0xff]
  %v1729 = vld [vmem:[#allocation2 + $0x88] sm:$0xff]
  %v1730 = vld [vmem:[#allocation2 + $0x90] sm:$0xff]
  %v1731 = vld [vmem:[#allocation2 + $0x98] sm:$0xff]
  %v1732 = vld [vmem:[#allocation2 + $0xa0] sm:$0xff]
  %v1733 = vld [vmem:[#allocation2 + $0xa8] sm:$0xff]
  %v1734 = vld [vmem:[#allocation2 + $0xb0] sm:$0xff]
  %v1735 = vld [vmem:[#allocation2 + $0xb8] sm:$0xff]
  %v1736 = vld [vmem:[#allocation2 + $0xc0] sm:$0xff]
  %v1737 = vld [vmem:[#allocation2 + $0xc8] sm:$0xff]
  %v1738 = vld [vmem:[#allocation2 + $0xd0] sm:$0xff]
  %v1739 = vld [vmem:[#allocation2 + $0xd8] sm:$0xff]
  %v1740 = vld [vmem:[#allocation2 + $0xe0] sm:$0xff]
  %v1741 = vld [vmem:[#allocation2 + $0xe8] sm:$0xff]
  %v1742 = vld [vmem:[#allocation2 + $0xf0] sm:$0xff]
  %v1743 = vld [vmem:[#allocation2 + $0xf8] sm:$0xff]
  %v1776 = vunpack.c.l.b16 %v1712
  %v1777 = vunpack.c.h.b16 %v1712
  %v1778 = vunpack.c.l.b16 %v1713
  %v1779 = vunpack.c.h.b16 %v1713
  %v1780 = vunpack.c.l.b16 %v1714
  %v1781 = vunpack.c.h.b16 %v1714
  %v1782 = vunpack.c.l.b16 %v1715
  %v1783 = vunpack.c.h.b16 %v1715
  %v1784 = vunpack.c.l.b16 %v1716
  %v1785 = vunpack.c.h.b16 %v1716
  %v1786 = vunpack.c.l.b16 %v1717
  %v1787 = vunpack.c.h.b16 %v1717
  %v1788 = vunpack.c.l.b16 %v1718
  %v1789 = vunpack.c.h.b16 %v1718
  %v1790 = vunpack.c.l.b16 %v1719
  %v1791 = vunpack.c.h.b16 %v1719
  %v1792 = vunpack.c.l.b16 %v1720
  %v1793 = vunpack.c.h.b16 %v1720
  %v1794 = vunpack.c.l.b16 %v1721
  %v1795 = vunpack.c.h.b16 %v1721
  %v1796 = vunpack.c.l.b16 %v1722
  %v1797 = vunpack.c.h.b16 %v1722
  %v1798 = vunpack.c.l.b16 %v1723
  %v1799 = vunpack.c.h.b16 %v1723
  %v1800 = vunpack.c.l.b16 %v1724
  %v1801 = vunpack.c.h.b16 %v1724
  %v1802 = vunpack.c.l.b16 %v1725
  %v1803 = vunpack.c.h.b16 %v1725
  %v1804 = vunpack.c.l.b16 %v1726
  %v1805 = vunpack.c.h.b16 %v1726
  %v1806 = vunpack.c.l.b16 %v1727
  %v1807 = vunpack.c.h.b16 %v1727
  %v1808 = vunpack.c.l.b16 %v1728
  %v1809 = vunpack.c.h.b16 %v1728
  %v1810 = vunpack.c.l.b16 %v1729
  %v1811 = vunpack.c.h.b16 %v1729
  %v1812 = vunpack.c.l.b16 %v1730
  %v1813 = vunpack.c.h.b16 %v1730
  %v1814 = vunpack.c.l.b16 %v1731
  %v1815 = vunpack.c.h.b16 %v1731
  %v1816 = vunpack.c.l.b16 %v1732
  %v1817 = vunpack.c.h.b16 %v1732
  %v1818 = vunpack.c.l.b16 %v1733
  %v1819 = vunpack.c.h.b16 %v1733
  %v1820 = vunpack.c.l.b16 %v1734
  %v1821 = vunpack.c.h.b16 %v1734
  %v1822 = vunpack.c.l.b16 %v1735
  %v1823 = vunpack.c.h.b16 %v1735
  %v1824 = vunpack.c.l.b16 %v1736
  %v1825 = vunpack.c.h.b16 %v1736
  %v1826 = vunpack.c.l.b16 %v1737
  %v1827 = vunpack.c.h.b16 %v1737
  %v1828 = vunpack.c.l.b16 %v1738
  %v1829 = vunpack.c.h.b16 %v1738
  %v1830 = vunpack.c.l.b16 %v1739
  %v1831 = vunpack.c.h.b16 %v1739
  %v1832 = vunpack.c.l.b16 %v1740
  %v1833 = vunpack.c.h.b16 %v1740
  %v1834 = vunpack.c.l.b16 %v1741
  %v1835 = vunpack.c.h.b16 %v1741
  %v1836 = vunpack.c.l.b16 %v1742
  %v1837 = vunpack.c.h.b16 %v1742
  %v1838 = vunpack.c.l.b16 %v1743
  %v1839 = vunpack.c.h.b16 %v1743
  %v1840 = vpack.c.b16 %v1780, %v1776
  %v1841 = vpack.c.b16 %v1781, %v1777
  %v1842 = vpack.c.b16 %v1782, %v1778
  %v1843 = vpack.c.b16 %v1783, %v1779
  %v1844 = vpack.c.b16 %v1788, %v1784
  %v1845 = vpack.c.b16 %v1789, %v1785
  %v1846 = vpack.c.b16 %v1790, %v1786
  %v1847 = vpack.c.b16 %v1791, %v1787
  %v1848 = vpack.c.b16 %v1796, %v1792
  %v1849 = vpack.c.b16 %v1797, %v1793
  %v1850 = vpack.c.b16 %v1798, %v1794
  %v1851 = vpack.c.b16 %v1799, %v1795
  %v1852 = vpack.c.b16 %v1804, %v1800
  %v1853 = vpack.c.b16 %v1805, %v1801
  %v1854 = vpack.c.b16 %v1806, %v1802
  %v1855 = vpack.c.b16 %v1807, %v1803
  %v1856 = vpack.c.b16 %v1812, %v1808
  %v1857 = vpack.c.b16 %v1813, %v1809
  %v1858 = vpack.c.b16 %v1814, %v1810
  %v1859 = vpack.c.b16 %v1815, %v1811
  %v1860 = vpack.c.b16 %v1820, %v1816
  %v1861 = vpack.c.b16 %v1821, %v1817
  %v1862 = vpack.c.b16 %v1822, %v1818
  %v1863 = vpack.c.b16 %v1823, %v1819
  %v1864 = vpack.c.b16 %v1828, %v1824
  %v1865 = vpack.c.b16 %v1829, %v1825
  %v1866 = vpack.c.b16 %v1830, %v1826
  %v1867 = vpack.c.b16 %v1831, %v1827
  %v1868 = vpack.c.b16 %v1836, %v1832
  %v1869 = vpack.c.b16 %v1837, %v1833
  %v1870 = vpack.c.b16 %v1838, %v1834
  %v1871 = vpack.c.b16 %v1839, %v1835
  %1904 = vmatpush.bf16.msra.mxu0 %v1868
  %1905 = vmatpush.bf16.msra.mxu0 %v1864
  %1906 = vmatpush.bf16.msra.mxu0 %v1860
  %1907 = vmatpush.bf16.msra.mxu0 %v1856
  %1908 = vmatpush.bf16.msra.mxu0 %v1852
  %1909 = vmatpush.bf16.msra.mxu0 %v1848
  %1910 = vmatpush.bf16.msra.mxu0 %v1844
  %1911 = vmatpush.bf16.msra.mxu0 %v1840
  %1912 = vmatmul.bf16.gmra.mxu0 %v1711
  %v1913 = vpop.f32.mrf.mxu0
  %v1914 = vadd.f32 0.0, %v1913
  %v1915 = vpop.f32.mrf.mxu0
  %1916 = vdwg.mxu0
  %1917 = vmatpush.bf16.msra.mxu0 %v1869
  %1918 = vmatpush.bf16.msra.mxu0 %v1865
  %1919 = vmatpush.bf16.msra.mxu0 %v1861
  %1920 = vmatpush.bf16.msra.mxu0 %v1857
  %1921 = vmatpush.bf16.msra.mxu0 %v1853
  %1922 = vmatpush.bf16.msra.mxu0 %v1849
  %1923 = vmatpush.bf16.msra.mxu0 %v1845
  %1924 = vmatpush.bf16.msra.mxu0 %v1841
  %1925 = vmatmul.bf16.gmra.mxu0 %v1711
  %v1926 = vpop.f32.mrf.mxu0
  %v1927 = vadd.f32 0.0, %v1926
  %v1928 = vpop.f32.mrf.mxu0
  %1929 = vdwg.mxu0
  %1930 = vmatpush.bf16.msra.mxu0 %v1870
  %1931 = vmatpush.bf16.msra.mxu0 %v1866
  %1932 = vmatpush.bf16.msra.mxu0 %v1862
  %1933 = vmatpush.bf16.msra.mxu0 %v1858
  %1934 = vmatpush.bf16.msra.mxu0 %v1854
  %1935 = vmatpush.bf16.msra.mxu0 %v1850
  %1936 = vmatpush.bf16.msra.mxu0 %v1846
  %1937 = vmatpush.bf16.msra.mxu0 %v1842
  %1938 = vmatmul.bf16.gmra.mxu0 %v1711
  %v1939 = vpop.f32.mrf.mxu0
  %v1940 = vadd.f32 0.0, %v1939
  %v1941 = vpop.f32.mrf.mxu0
  %1942 = vdwg.mxu0
  %1943 = vmatpush.bf16.msra.mxu0 %v1871
  %1944 = vmatpush.bf16.msra.mxu0 %v1867
  %1945 = vmatpush.bf16.msra.mxu0 %v1863
  %1946 = vmatpush.bf16.msra.mxu0 %v1859
  %1947 = vmatpush.bf16.msra.mxu0 %v1855
  %1948 = vmatpush.bf16.msra.mxu0 %v1851
  %1949 = vmatpush.bf16.msra.mxu0 %v1847
  %1950 = vmatpush.bf16.msra.mxu0 %v1843
  %1951 = vmatmul.bf16.gmra.mxu0 %v1711
  %v1952 = vpop.f32.mrf.mxu0
  %v1953 = vadd.f32 0.0, %v1952
  %v1954 = vpop.f32.mrf.mxu0
  %1955 = vdwg.mxu0
  %v1956 = vadd.f32 %v1707, %v1914
  %v1957 = vadd.f32 %v1708, %v1927
  %v1958 = vadd.f32 %v1709, %v1940
  %v1959 = vadd.f32 %v1710, %v1953
  %v1960 = vxor.u32 %v1956, 2147483648
  %v1961 = vmul.f32 %v1960, 1.442695
  %v1962 = vpow.pop %v1961
  %v1963 = vadd.f32 %v1962, 1.0
  %v1964 = vrcp.pop %v1963
  %v1965 = vmul.f32 %v1963, %v1964
  %v1966 = vsub.f32 1.0, %v1965
  %v1967 = vmul.f32 %v1964, %v1966
  %v1968 = vadd.f32 %v1964, %v1967
  %vm1969 = vweird.f32 %v1963
  %vm1970 = vweird.f32 %v1964
  %vm1971 = vmor %vm1969, %vm1970
  %v1972 = vsel %vm1971, %v1964, %v1968
  %v1973 = vand.u32 2147483647, %v1963
  %vm1974 = vcmp.eq.f32.partialorder %v1973, 8.507059e+37
  %v1975 = vand.u32 %v1963, 2147483648
  %v1976 = vor.u32 1.1754944e-38, %v1975
  %v1977 = vsel %vm1974, %v1976, %v1972
  %v1978 = vmul.f32 1.0, %v1977
  %v1979 = vxor.u32 %v1957, 2147483648
  %v1980 = vmul.f32 %v1979, 1.442695
  %v1981 = vpow.pop %v1980
  %v1982 = vadd.f32 %v1981, 1.0
  %v1983 = vrcp.pop %v1982
  %v1984 = vmul.f32 %v1982, %v1983
  %v1985 = vsub.f32 1.0, %v1984
  %v1986 = vmul.f32 %v1983, %v1985
  %v1987 = vadd.f32 %v1983, %v1986
  %vm1988 = vweird.f32 %v1982
  %vm1989 = vweird.f32 %v1983
  %vm1990 = vmor %vm1988, %vm1989
  %v1991 = vsel %vm1990, %v1983, %v1987
  %v1992 = vand.u32 2147483647, %v1982
  %vm1993 = vcmp.eq.f32.partialorder %v1992, 8.507059e+37
  %v1994 = vand.u32 %v1982, 2147483648
  %v1995 = vor.u32 1.1754944e-38, %v1994
  %v1996 = vsel %vm1993, %v1995, %v1991
  %v1997 = vmul.f32 1.0, %v1996
  %v1998 = vtanh.pop %v1958
  %v1999 = vxor.u32 %v1959, 2147483648
  %v2000 = vmul.f32 %v1999, 1.442695
  %v2001 = vpow.pop %v2000
  %v2002 = vadd.f32 %v2001, 1.0
  %v2003 = vrcp.pop %v2002
  %v2004 = vmul.f32 %v2002, %v2003
  %v2005 = vsub.f32 1.0, %v2004
  %v2006 = vmul.f32 %v2003, %v2005
  %v2007 = vadd.f32 %v2003, %v2006
  %vm2008 = vweird.f32 %v2002
  %vm2009 = vweird.f32 %v2003
  %vm2010 = vmor %vm2008, %vm2009
  %v2011 = vsel %vm2010, %v2003, %v2007
  %v2012 = vand.u32 2147483647, %v2002
  %vm2013 = vcmp.eq.f32.partialorder %v2012, 8.507059e+37
  %v2014 = vand.u32 %v2002, 2147483648
  %v2015 = vor.u32 1.1754944e-38, %v2014
  %v2016 = vsel %vm2013, %v2015, %v2011
  %v2017 = vmul.f32 1.0, %v2016
  %v2018 = vmul.f32 %v1997, %v1699
  %v2019 = vmul.f32 %v1978, %v1998
  %v2020 = vadd.f32 %v2018, %v2019
  %v2021 = vtanh.pop %v2020
  %v2022 = vmul.f32 %v2017, %v2021
  %s2023 = scalar_lea.vmem %s2, 40
  %2024 = vst [vmem:[%s2023] sm:$0xff] %v2022
  %s2025 = scalar_lea.vmem %s0, 96
  %v2026 = vld [vmem:[%s2025] sm:$0xff]
  %v2027 = vld [vmem:[%s2025 + $0x8] sm:$0xff]
  %v2028 = vunpack.c.l.bf16 %v2026
  %v2029 = vunpack.c.h.bf16 %v2026
  %v2030 = vunpack.c.l.bf16 %v2027
  %v2031 = vunpack.c.h.bf16 %v2027
  %v2032 = vpack.c.bf16 %v2022, %v2022
  %v2033 = vld [vmem:[#allocation2] sm:$0xff]
  %v2034 = vld [vmem:[#allocation2 + $0x8] sm:$0xff]
  %v2035 = vld [vmem:[#allocation2 + $0x10] sm:$0xff]
  %v2036 = vld [vmem:[#allocation2 + $0x18] sm:$0xff]
  %v2037 = vld [vmem:[#allocation2 + $0x20] sm:$0xff]
  %v2038 = vld [vmem:[#allocation2 + $0x28] sm:$0xff]
  %v2039 = vld [vmem:[#allocation2 + $0x30] sm:$0xff]
  %v2040 = vld [vmem:[#allocation2 + $0x38] sm:$0xff]
  %v2041 = vld [vmem:[#allocation2 + $0x40] sm:$0xff]
  %v2042 = vld [vmem:[#allocation2 + $0x48] sm:$0xff]
  %v2043 = vld [vmem:[#allocation2 + $0x50] sm:$0xff]
  %v2044 = vld [vmem:[#allocation2 + $0x58] sm:$0xff]
  %v2045 = vld [vmem:[#allocation2 + $0x60] sm:$0xff]
  %v2046 = vld [vmem:[#allocation2 + $0x68] sm:$0xff]
  %v2047 = vld [vmem:[#allocation2 + $0x70] sm:$0xff]
  %v2048 = vld [vmem:[#allocation2 + $0x78] sm:$0xff]
  %v2049 = vld [vmem:[#allocation2 + $0x80] sm:$0xff]
  %v2050 = vld [vmem:[#allocation2 + $0x88] sm:$0xff]
  %v2051 = vld [vmem:[#allocation2 + $0x90] sm:$0xff]
  %v2052 = vld [vmem:[#allocation2 + $0x98] sm:$0xff]
  %v2053 = vld [vmem:[#allocation2 + $0xa0] sm:$0xff]
  %v2054 = vld [vmem:[#allocation2 + $0xa8] sm:$0xff]
  %v2055 = vld [vmem:[#allocation2 + $0xb0] sm:$0xff]
  %v2056 = vld [vmem:[#allocation2 + $0xb8] sm:$0xff]
  %v2057 = vld [vmem:[#allocation2 + $0xc0] sm:$0xff]
  %v2058 = vld [vmem:[#allocation2 + $0xc8] sm:$0xff]
  %v2059 = vld [vmem:[#allocation2 + $0xd0] sm:$0xff]
  %v2060 = vld [vmem:[#allocation2 + $0xd8] sm:$0xff]
  %v2061 = vld [vmem:[#allocation2 + $0xe0] sm:$0xff]
  %v2062 = vld [vmem:[#allocation2 + $0xe8] sm:$0xff]
  %v2063 = vld [vmem:[#allocation2 + $0xf0] sm:$0xff]
  %v2064 = vld [vmem:[#allocation2 + $0xf8] sm:$0xff]
  %v2097 = vunpack.c.l.b16 %v2033
  %v2098 = vunpack.c.h.b16 %v2033
  %v2099 = vunpack.c.l.b16 %v2034
  %v2100 = vunpack.c.h.b16 %v2034
  %v2101 = vunpack.c.l.b16 %v2035
  %v2102 = vunpack.c.h.b16 %v2035
  %v2103 = vunpack.c.l.b16 %v2036
  %v2104 = vunpack.c.h.b16 %v2036
  %v2105 = vunpack.c.l.b16 %v2037
  %v2106 = vunpack.c.h.b16 %v2037
  %v2107 = vunpack.c.l.b16 %v2038
  %v2108 = vunpack.c.h.b16 %v2038
  %v2109 = vunpack.c.l.b16 %v2039
  %v2110 = vunpack.c.h.b16 %v2039
  %v2111 = vunpack.c.l.b16 %v2040
  %v2112 = vunpack.c.h.b16 %v2040
  %v2113 = vunpack.c.l.b16 %v2041
  %v2114 = vunpack.c.h.b16 %v2041
  %v2115 = vunpack.c.l.b16 %v2042
  %v2116 = vunpack.c.h.b16 %v2042
  %v2117 = vunpack.c.l.b16 %v2043
  %v2118 = vunpack.c.h.b16 %v2043
  %v2119 = vunpack.c.l.b16 %v2044
  %v2120 = vunpack.c.h.b16 %v2044
  %v2121 = vunpack.c.l.b16 %v2045
  %v2122 = vunpack.c.h.b16 %v2045
  %v2123 = vunpack.c.l.b16 %v2046
  %v2124 = vunpack.c.h.b16 %v2046
  %v2125 = vunpack.c.l.b16 %v2047
  %v2126 = vunpack.c.h.b16 %v2047
  %v2127 = vunpack.c.l.b16 %v2048
  %v2128 = vunpack.c.h.b16 %v2048
  %v2129 = vunpack.c.l.b16 %v2049
  %v2130 = vunpack.c.h.b16 %v2049
  %v2131 = vunpack.c.l.b16 %v2050
  %v2132 = vunpack.c.h.b16 %v2050
  %v2133 = vunpack.c.l.b16 %v2051
  %v2134 = vunpack.c.h.b16 %v2051
  %v2135 = vunpack.c.l.b16 %v2052
  %v2136 = vunpack.c.h.b16 %v2052
  %v2137 = vunpack.c.l.b16 %v2053
  %v2138 = vunpack.c.h.b16 %v2053
  %v2139 = vunpack.c.l.b16 %v2054
  %v2140 = vunpack.c.h.b16 %v2054
  %v2141 = vunpack.c.l.b16 %v2055
  %v2142 = vunpack.c.h.b16 %v2055
  %v2143 = vunpack.c.l.b16 %v2056
  %v2144 = vunpack.c.h.b16 %v2056
  %v2145 = vunpack.c.l.b16 %v2057
  %v2146 = vunpack.c.h.b16 %v2057
  %v2147 = vunpack.c.l.b16 %v2058
  %v2148 = vunpack.c.h.b16 %v2058
  %v2149 = vunpack.c.l.b16 %v2059
  %v2150 = vunpack.c.h.b16 %v2059
  %v2151 = vunpack.c.l.b16 %v2060
  %v2152 = vunpack.c.h.b16 %v2060
  %v2153 = vunpack.c.l.b16 %v2061
  %v2154 = vunpack.c.h.b16 %v2061
  %v2155 = vunpack.c.l.b16 %v2062
  %v2156 = vunpack.c.h.b16 %v2062
  %v2157 = vunpack.c.l.b16 %v2063
  %v2158 = vunpack.c.h.b16 %v2063
  %v2159 = vunpack.c.l.b16 %v2064
  %v2160 = vunpack.c.h.b16 %v2064
  %v2161 = vpack.c.b16 %v2101, %v2097
  %v2162 = vpack.c.b16 %v2102, %v2098
  %v2163 = vpack.c.b16 %v2103, %v2099
  %v2164 = vpack.c.b16 %v2104, %v2100
  %v2165 = vpack.c.b16 %v2109, %v2105
  %v2166 = vpack.c.b16 %v2110, %v2106
  %v2167 = vpack.c.b16 %v2111, %v2107
  %v2168 = vpack.c.b16 %v2112, %v2108
  %v2169 = vpack.c.b16 %v2117, %v2113
  %v2170 = vpack.c.b16 %v2118, %v2114
  %v2171 = vpack.c.b16 %v2119, %v2115
  %v2172 = vpack.c.b16 %v2120, %v2116
  %v2173 = vpack.c.b16 %v2125, %v2121
  %v2174 = vpack.c.b16 %v2126, %v2122
  %v2175 = vpack.c.b16 %v2127, %v2123
  %v2176 = vpack.c.b16 %v2128, %v2124
  %v2177 = vpack.c.b16 %v2133, %v2129
  %v2178 = vpack.c.b16 %v2134, %v2130
  %v2179 = vpack.c.b16 %v2135, %v2131
  %v2180 = vpack.c.b16 %v2136, %v2132
  %v2181 = vpack.c.b16 %v2141, %v2137
  %v2182 = vpack.c.b16 %v2142, %v2138
  %v2183 = vpack.c.b16 %v2143, %v2139
  %v2184 = vpack.c.b16 %v2144, %v2140
  %v2185 = vpack.c.b16 %v2149, %v2145
  %v2186 = vpack.c.b16 %v2150, %v2146
  %v2187 = vpack.c.b16 %v2151, %v2147
  %v2188 = vpack.c.b16 %v2152, %v2148
  %v2189 = vpack.c.b16 %v2157, %v2153
  %v2190 = vpack.c.b16 %v2158, %v2154
  %v2191 = vpack.c.b16 %v2159, %v2155
  %v2192 = vpack.c.b16 %v2160, %v2156
  %2225 = vmatpush.bf16.msra.mxu0 %v2189
  %2226 = vmatpush.bf16.msra.mxu0 %v2185
  %2227 = vmatpush.bf16.msra.mxu0 %v2181
  %2228 = vmatpush.bf16.msra.mxu0 %v2177
  %2229 = vmatpush.bf16.msra.mxu0 %v2173
  %2230 = vmatpush.bf16.msra.mxu0 %v2169
  %2231 = vmatpush.bf16.msra.mxu0 %v2165
  %2232 = vmatpush.bf16.msra.mxu0 %v2161
  %2233 = vmatmul.bf16.gmra.mxu0 %v2032
  %v2234 = vpop.f32.mrf.mxu0
  %v2235 = vadd.f32 0.0, %v2234
  %v2236 = vpop.f32.mrf.mxu0
  %2237 = vdwg.mxu0
  %2238 = vmatpush.bf16.msra.mxu0 %v2190
  %2239 = vmatpush.bf16.msra.mxu0 %v2186
  %2240 = vmatpush.bf16.msra.mxu0 %v2182
  %2241 = vmatpush.bf16.msra.mxu0 %v2178
  %2242 = vmatpush.bf16.msra.mxu0 %v2174
  %2243 = vmatpush.bf16.msra.mxu0 %v2170
  %2244 = vmatpush.bf16.msra.mxu0 %v2166
  %2245 = vmatpush.bf16.msra.mxu0 %v2162
  %2246 = vmatmul.bf16.gmra.mxu0 %v2032
  %v2247 = vpop.f32.mrf.mxu0
  %v2248 = vadd.f32 0.0, %v2247
  %v2249 = vpop.f32.mrf.mxu0
  %2250 = vdwg.mxu0
  %2251 = vmatpush.bf16.msra.mxu0 %v2191
  %2252 = vmatpush.bf16.msra.mxu0 %v2187
  %2253 = vmatpush.bf16.msra.mxu0 %v2183
  %2254 = vmatpush.bf16.msra.mxu0 %v2179
  %2255 = vmatpush.bf16.msra.mxu0 %v2175
  %2256 = vmatpush.bf16.msra.mxu0 %v2171
  %2257 = vmatpush.bf16.msra.mxu0 %v2167
  %2258 = vmatpush.bf16.msra.mxu0 %v2163
  %2259 = vmatmul.bf16.gmra.mxu0 %v2032
  %v2260 = vpop.f32.mrf.mxu0
  %v2261 = vadd.f32 0.0, %v2260
  %v2262 = vpop.f32.mrf.mxu0
  %2263 = vdwg.mxu0
  %2264 = vmatpush.bf16.msra.mxu0 %v2192
  %2265 = vmatpush.bf16.msra.mxu0 %v2188
  %2266 = vmatpush.bf16.msra.mxu0 %v2184
  %2267 = vmatpush.bf16.msra.mxu0 %v2180
  %2268 = vmatpush.bf16.msra.mxu0 %v2176
  %2269 = vmatpush.bf16.msra.mxu0 %v2172
  %2270 = vmatpush.bf16.msra.mxu0 %v2168
  %2271 = vmatpush.bf16.msra.mxu0 %v2164
  %2272 = vmatmul.bf16.gmra.mxu0 %v2032
  %v2273 = vpop.f32.mrf.mxu0
  %v2274 = vadd.f32 0.0, %v2273
  %v2275 = vpop.f32.mrf.mxu0
  %2276 = vdwg.mxu0
  %v2277 = vadd.f32 %v2028, %v2235
  %v2278 = vadd.f32 %v2029, %v2248
  %v2279 = vadd.f32 %v2030, %v2261
  %v2280 = vadd.f32 %v2031, %v2274
  %v2281 = vxor.u32 %v2277, 2147483648
  %v2282 = vmul.f32 %v2281, 1.442695
  %v2283 = vpow.pop %v2282
  %v2284 = vadd.f32 %v2283, 1.0
  %v2285 = vrcp.pop %v2284
  %v2286 = vmul.f32 %v2284, %v2285
  %v2287 = vsub.f32 1.0, %v2286
  %v2288 = vmul.f32 %v2285, %v2287
  %v2289 = vadd.f32 %v2285, %v2288
  %vm2290 = vweird.f32 %v2284
  %vm2291 = vweird.f32 %v2285
  %vm2292 = vmor %vm2290, %vm2291
  %v2293 = vsel %vm2292, %v2285, %v2289
  %v2294 = vand.u32 2147483647, %v2284
  %vm2295 = vcmp.eq.f32.partialorder %v2294, 8.507059e+37
  %v2296 = vand.u32 %v2284, 2147483648
  %v2297 = vor.u32 1.1754944e-38, %v2296
  %v2298 = vsel %vm2295, %v2297, %v2293
  %v2299 = vmul.f32 1.0, %v2298
  %v2300 = vxor.u32 %v2278, 2147483648
  %v2301 = vmul.f32 %v2300, 1.442695
  %v2302 = vpow.pop %v2301
  %v2303 = vadd.f32 %v2302, 1.0
  %v2304 = vrcp.pop %v2303
  %v2305 = vmul.f32 %v2303, %v2304
  %v2306 = vsub.f32 1.0, %v2305
  %v2307 = vmul.f32 %v2304, %v2306
  %v2308 = vadd.f32 %v2304, %v2307
  %vm2309 = vweird.f32 %v2303
  %vm2310 = vweird.f32 %v2304
  %vm2311 = vmor %vm2309, %vm2310
  %v2312 = vsel %vm2311, %v2304, %v2308
  %v2313 = vand.u32 2147483647, %v2303
  %vm2314 = vcmp.eq.f32.partialorder %v2313, 8.507059e+37
  %v2315 = vand.u32 %v2303, 2147483648
  %v2316 = vor.u32 1.1754944e-38, %v2315
  %v2317 = vsel %vm2314, %v2316, %v2312
  %v2318 = vmul.f32 1.0, %v2317
  %v2319 = vtanh.pop %v2279
  %v2320 = vxor.u32 %v2280, 2147483648
  %v2321 = vmul.f32 %v2320, 1.442695
  %v2322 = vpow.pop %v2321
  %v2323 = vadd.f32 %v2322, 1.0
  %v2324 = vrcp.pop %v2323
  %v2325 = vmul.f32 %v2323, %v2324
  %v2326 = vsub.f32 1.0, %v2325
  %v2327 = vmul.f32 %v2324, %v2326
  %v2328 = vadd.f32 %v2324, %v2327
  %vm2329 = vweird.f32 %v2323
  %vm2330 = vweird.f32 %v2324
  %vm2331 = vmor %vm2329, %vm2330
  %v2332 = vsel %vm2331, %v2324, %v2328
  %v2333 = vand.u32 2147483647, %v2323
  %vm2334 = vcmp.eq.f32.partialorder %v2333, 8.507059e+37
  %v2335 = vand.u32 %v2323, 2147483648
  %v2336 = vor.u32 1.1754944e-38, %v2335
  %v2337 = vsel %vm2334, %v2336, %v2332
  %v2338 = vmul.f32 1.0, %v2337
  %v2339 = vmul.f32 %v2318, %v2020
  %v2340 = vmul.f32 %v2299, %v2319
  %v2341 = vadd.f32 %v2339, %v2340
  %v2342 = vtanh.pop %v2341
  %v2343 = vmul.f32 %v2338, %v2342
  %s2344 = scalar_lea.vmem %s2, 48
  %2345 = vst [vmem:[%s2344] sm:$0xff] %v2343
  %s2346 = scalar_lea.vmem %s0, 112
  %v2347 = vld [vmem:[%s2346] sm:$0xff]
  %v2348 = vld [vmem:[%s2346 + $0x8] sm:$0xff]
  %v2349 = vunpack.c.l.bf16 %v2347
  %v2350 = vunpack.c.h.bf16 %v2347
  %v2351 = vunpack.c.l.bf16 %v2348
  %v2352 = vunpack.c.h.bf16 %v2348
  %v2353 = vpack.c.bf16 %v2343, %v2343
  %v2354 = vld [vmem:[#allocation2] sm:$0xff]
  %v2355 = vld [vmem:[#allocation2 + $0x8] sm:$0xff]
  %v2356 = vld [vmem:[#allocation2 + $0x10] sm:$0xff]
  %v2357 = vld [vmem:[#allocation2 + $0x18] sm:$0xff]
  %v2358 = vld [vmem:[#allocation2 + $0x20] sm:$0xff]
  %v2359 = vld [vmem:[#allocation2 + $0x28] sm:$0xff]
  %v2360 = vld [vmem:[#allocation2 + $0x30] sm:$0xff]
  %v2361 = vld [vmem:[#allocation2 + $0x38] sm:$0xff]
  %v2362 = vld [vmem:[#allocation2 + $0x40] sm:$0xff]
  %v2363 = vld [vmem:[#allocation2 + $0x48] sm:$0xff]
  %v2364 = vld [vmem:[#allocation2 + $0x50] sm:$0xff]
  %v2365 = vld [vmem:[#allocation2 + $0x58] sm:$0xff]
  %v2366 = vld [vmem:[#allocation2 + $0x60] sm:$0xff]
  %v2367 = vld [vmem:[#allocation2 + $0x68] sm:$0xff]
  %v2368 = vld [vmem:[#allocation2 + $0x70] sm:$0xff]
  %v2369 = vld [vmem:[#allocation2 + $0x78] sm:$0xff]
  %v2370 = vld [vmem:[#allocation2 + $0x80] sm:$0xff]
  %v2371 = vld [vmem:[#allocation2 + $0x88] sm:$0xff]
  %v2372 = vld [vmem:[#allocation2 + $0x90] sm:$0xff]
  %v2373 = vld [vmem:[#allocation2 + $0x98] sm:$0xff]
  %v2374 = vld [vmem:[#allocation2 + $0xa0] sm:$0xff]
  %v2375 = vld [vmem:[#allocation2 + $0xa8] sm:$0xff]
  %v2376 = vld [vmem:[#allocation2 + $0xb0] sm:$0xff]
  %v2377 = vld [vmem:[#allocation2 + $0xb8] sm:$0xff]
  %v2378 = vld [vmem:[#allocation2 + $0xc0] sm:$0xff]
  %v2379 = vld [vmem:[#allocation2 + $0xc8] sm:$0xff]
  %v2380 = vld [vmem:[#allocation2 + $0xd0] sm:$0xff]
  %v2381 = vld [vmem:[#allocation2 + $0xd8] sm:$0xff]
  %v2382 = vld [vmem:[#allocation2 + $0xe0] sm:$0xff]
  %v2383 = vld [vmem:[#allocation2 + $0xe8] sm:$0xff]
  %v2384 = vld [vmem:[#allocation2 + $0xf0] sm:$0xff]
  %v2385 = vld [vmem:[#allocation2 + $0xf8] sm:$0xff]
  %v2418 = vunpack.c.l.b16 %v2354
  %v2419 = vunpack.c.h.b16 %v2354
  %v2420 = vunpack.c.l.b16 %v2355
  %v2421 = vunpack.c.h.b16 %v2355
  %v2422 = vunpack.c.l.b16 %v2356
  %v2423 = vunpack.c.h.b16 %v2356
  %v2424 = vunpack.c.l.b16 %v2357
  %v2425 = vunpack.c.h.b16 %v2357
  %v2426 = vunpack.c.l.b16 %v2358
  %v2427 = vunpack.c.h.b16 %v2358
  %v2428 = vunpack.c.l.b16 %v2359
  %v2429 = vunpack.c.h.b16 %v2359
  %v2430 = vunpack.c.l.b16 %v2360
  %v2431 = vunpack.c.h.b16 %v2360
  %v2432 = vunpack.c.l.b16 %v2361
  %v2433 = vunpack.c.h.b16 %v2361
  %v2434 = vunpack.c.l.b16 %v2362
  %v2435 = vunpack.c.h.b16 %v2362
  %v2436 = vunpack.c.l.b16 %v2363
  %v2437 = vunpack.c.h.b16 %v2363
  %v2438 = vunpack.c.l.b16 %v2364
  %v2439 = vunpack.c.h.b16 %v2364
  %v2440 = vunpack.c.l.b16 %v2365
  %v2441 = vunpack.c.h.b16 %v2365
  %v2442 = vunpack.c.l.b16 %v2366
  %v2443 = vunpack.c.h.b16 %v2366
  %v2444 = vunpack.c.l.b16 %v2367
  %v2445 = vunpack.c.h.b16 %v2367
  %v2446 = vunpack.c.l.b16 %v2368
  %v2447 = vunpack.c.h.b16 %v2368
  %v2448 = vunpack.c.l.b16 %v2369
  %v2449 = vunpack.c.h.b16 %v2369
  %v2450 = vunpack.c.l.b16 %v2370
  %v2451 = vunpack.c.h.b16 %v2370
  %v2452 = vunpack.c.l.b16 %v2371
  %v2453 = vunpack.c.h.b16 %v2371
  %v2454 = vunpack.c.l.b16 %v2372
  %v2455 = vunpack.c.h.b16 %v2372
  %v2456 = vunpack.c.l.b16 %v2373
  %v2457 = vunpack.c.h.b16 %v2373
  %v2458 = vunpack.c.l.b16 %v2374
  %v2459 = vunpack.c.h.b16 %v2374
  %v2460 = vunpack.c.l.b16 %v2375
  %v2461 = vunpack.c.h.b16 %v2375
  %v2462 = vunpack.c.l.b16 %v2376
  %v2463 = vunpack.c.h.b16 %v2376
  %v2464 = vunpack.c.l.b16 %v2377
  %v2465 = vunpack.c.h.b16 %v2377
  %v2466 = vunpack.c.l.b16 %v2378
  %v2467 = vunpack.c.h.b16 %v2378
  %v2468 = vunpack.c.l.b16 %v2379
  %v2469 = vunpack.c.h.b16 %v2379
  %v2470 = vunpack.c.l.b16 %v2380
  %v2471 = vunpack.c.h.b16 %v2380
  %v2472 = vunpack.c.l.b16 %v2381
  %v2473 = vunpack.c.h.b16 %v2381
  %v2474 = vunpack.c.l.b16 %v2382
  %v2475 = vunpack.c.h.b16 %v2382
  %v2476 = vunpack.c.l.b16 %v2383
  %v2477 = vunpack.c.h.b16 %v2383
  %v2478 = vunpack.c.l.b16 %v2384
  %v2479 = vunpack.c.h.b16 %v2384
  %v2480 = vunpack.c.l.b16 %v2385
  %v2481 = vunpack.c.h.b16 %v2385
  %v2482 = vpack.c.b16 %v2422, %v2418
  %v2483 = vpack.c.b16 %v2423, %v2419
  %v2484 = vpack.c.b16 %v2424, %v2420
  %v2485 = vpack.c.b16 %v2425, %v2421
  %v2486 = vpack.c.b16 %v2430, %v2426
  %v2487 = vpack.c.b16 %v2431, %v2427
  %v2488 = vpack.c.b16 %v2432, %v2428
  %v2489 = vpack.c.b16 %v2433, %v2429
  %v2490 = vpack.c.b16 %v2438, %v2434
  %v2491 = vpack.c.b16 %v2439, %v2435
  %v2492 = vpack.c.b16 %v2440, %v2436
  %v2493 = vpack.c.b16 %v2441, %v2437
  %v2494 = vpack.c.b16 %v2446, %v2442
  %v2495 = vpack.c.b16 %v2447, %v2443
  %v2496 = vpack.c.b16 %v2448, %v2444
  %v2497 = vpack.c.b16 %v2449, %v2445
  %v2498 = vpack.c.b16 %v2454, %v2450
  %v2499 = vpack.c.b16 %v2455, %v2451
  %v2500 = vpack.c.b16 %v2456, %v2452
  %v2501 = vpack.c.b16 %v2457, %v2453
  %v2502 = vpack.c.b16 %v2462, %v2458
  %v2503 = vpack.c.b16 %v2463, %v2459
  %v2504 = vpack.c.b16 %v2464, %v2460
  %v2505 = vpack.c.b16 %v2465, %v2461
  %v2506 = vpack.c.b16 %v2470, %v2466
  %v2507 = vpack.c.b16 %v2471, %v2467
  %v2508 = vpack.c.b16 %v2472, %v2468
  %v2509 = vpack.c.b16 %v2473, %v2469
  %v2510 = vpack.c.b16 %v2478, %v2474
  %v2511 = vpack.c.b16 %v2479, %v2475
  %v2512 = vpack.c.b16 %v2480, %v2476
  %v2513 = vpack.c.b16 %v2481, %v2477
  %2546 = vmatpush.bf16.msra.mxu0 %v2510
  %2547 = vmatpush.bf16.msra.mxu0 %v2506
  %2548 = vmatpush.bf16.msra.mxu0 %v2502
  %2549 = vmatpush.bf16.msra.mxu0 %v2498
  %2550 = vmatpush.bf16.msra.mxu0 %v2494
  %2551 = vmatpush.bf16.msra.mxu0 %v2490
  %2552 = vmatpush.bf16.msra.mxu0 %v2486
  %2553 = vmatpush.bf16.msra.mxu0 %v2482
  %2554 = vmatmul.bf16.gmra.mxu0 %v2353
  %v2555 = vpop.f32.mrf.mxu0
  %v2556 = vadd.f32 0.0, %v2555
  %v2557 = vpop.f32.mrf.mxu0
  %2558 = vdwg.mxu0
  %2559 = vmatpush.bf16.msra.mxu0 %v2511
  %2560 = vmatpush.bf16.msra.mxu0 %v2507
  %2561 = vmatpush.bf16.msra.mxu0 %v2503
  %2562 = vmatpush.bf16.msra.mxu0 %v2499
  %2563 = vmatpush.bf16.msra.mxu0 %v2495
  %2564 = vmatpush.bf16.msra.mxu0 %v2491
  %2565 = vmatpush.bf16.msra.mxu0 %v2487
  %2566 = vmatpush.bf16.msra.mxu0 %v2483
  %2567 = vmatmul.bf16.gmra.mxu0 %v2353
  %v2568 = vpop.f32.mrf.mxu0
  %v2569 = vadd.f32 0.0, %v2568
  %v2570 = vpop.f32.mrf.mxu0
  %2571 = vdwg.mxu0
  %2572 = vmatpush.bf16.msra.mxu0 %v2512
  %2573 = vmatpush.bf16.msra.mxu0 %v2508
  %2574 = vmatpush.bf16.msra.mxu0 %v2504
  %2575 = vmatpush.bf16.msra.mxu0 %v2500
  %2576 = vmatpush.bf16.msra.mxu0 %v2496
  %2577 = vmatpush.bf16.msra.mxu0 %v2492
  %2578 = vmatpush.bf16.msra.mxu0 %v2488
  %2579 = vmatpush.bf16.msra.mxu0 %v2484
  %2580 = vmatmul.bf16.gmra.mxu0 %v2353
  %v2581 = vpop.f32.mrf.mxu0
  %v2582 = vadd.f32 0.0, %v2581
  %v2583 = vpop.f32.mrf.mxu0
  %2584 = vdwg.mxu0
  %2585 = vmatpush.bf16.msra.mxu0 %v2513
  %2586 = vmatpush.bf16.msra.mxu0 %v2509
  %2587 = vmatpush.bf16.msra.mxu0 %v2505
  %2588 = vmatpush.bf16.msra.mxu0 %v2501
  %2589 = vmatpush.bf16.msra.mxu0 %v2497
  %2590 = vmatpush.bf16.msra.mxu0 %v2493
  %2591 = vmatpush.bf16.msra.mxu0 %v2489
  %2592 = vmatpush.bf16.msra.mxu0 %v2485
  %2593 = vmatmul.bf16.gmra.mxu0 %v2353
  %v2594 = vpop.f32.mrf.mxu0
  %v2595 = vadd.f32 0.0, %v2594
  %v2596 = vpop.f32.mrf.mxu0
  %2597 = vdwg.mxu0
  %v2598 = vadd.f32 %v2349, %v2556
  %v2599 = vadd.f32 %v2350, %v2569
  %v2600 = vadd.f32 %v2351, %v2582
  %v2601 = vadd.f32 %v2352, %v2595
  %v2602 = vxor.u32 %v2598, 2147483648
  %v2603 = vmul.f32 %v2602, 1.442695
  %v2604 = vpow.pop %v2603
  %v2605 = vadd.f32 %v2604, 1.0
  %v2606 = vrcp.pop %v2605
  %v2607 = vmul.f32 %v2605, %v2606
  %v2608 = vsub.f32 1.0, %v2607
  %v2609 = vmul.f32 %v2606, %v2608
  %v2610 = vadd.f32 %v2606, %v2609
  %vm2611 = vweird.f32 %v2605
  %vm2612 = vweird.f32 %v2606
  %vm2613 = vmor %vm2611, %vm2612
  %v2614 = vsel %vm2613, %v2606, %v2610
  %v2615 = vand.u32 2147483647, %v2605
  %vm2616 = vcmp.eq.f32.partialorder %v2615, 8.507059e+37
  %v2617 = vand.u32 %v2605, 2147483648
  %v2618 = vor.u32 1.1754944e-38, %v2617
  %v2619 = vsel %vm2616, %v2618, %v2614
  %v2620 = vmul.f32 1.0, %v2619
  %v2621 = vxor.u32 %v2599, 2147483648
  %v2622 = vmul.f32 %v2621, 1.442695
  %v2623 = vpow.pop %v2622
  %v2624 = vadd.f32 %v2623, 1.0
  %v2625 = vrcp.pop %v2624
  %v2626 = vmul.f32 %v2624, %v2625
  %v2627 = vsub.f32 1.0, %v2626
  %v2628 = vmul.f32 %v2625, %v2627
  %v2629 = vadd.f32 %v2625, %v2628
  %vm2630 = vweird.f32 %v2624
  %vm2631 = vweird.f32 %v2625
  %vm2632 = vmor %vm2630, %vm2631
  %v2633 = vsel %vm2632, %v2625, %v2629
  %v2634 = vand.u32 2147483647, %v2624
  %vm2635 = vcmp.eq.f32.partialorder %v2634, 8.507059e+37
  %v2636 = vand.u32 %v2624, 2147483648
  %v2637 = vor.u32 1.1754944e-38, %v2636
  %v2638 = vsel %vm2635, %v2637, %v2633
  %v2639 = vmul.f32 1.0, %v2638
  %v2640 = vtanh.pop %v2600
  %v2641 = vxor.u32 %v2601, 2147483648
  %v2642 = vmul.f32 %v2641, 1.442695
  %v2643 = vpow.pop %v2642
  %v2644 = vadd.f32 %v2643, 1.0
  %v2645 = vrcp.pop %v2644
  %v2646 = vmul.f32 %v2644, %v2645
  %v2647 = vsub.f32 1.0, %v2646
  %v2648 = vmul.f32 %v2645, %v2647
  %v2649 = vadd.f32 %v2645, %v2648
  %vm2650 = vweird.f32 %v2644
  %vm2651 = vweird.f32 %v2645
  %vm2652 = vmor %vm2650, %vm2651
  %v2653 = vsel %vm2652, %v2645, %v2649
  %v2654 = vand.u32 2147483647, %v2644
  %vm2655 = vcmp.eq.f32.partialorder %v2654, 8.507059e+37
  %v2656 = vand.u32 %v2644, 2147483648
  %v2657 = vor.u32 1.1754944e-38, %v2656
  %v2658 = vsel %vm2655, %v2657, %v2653
  %v2659 = vmul.f32 1.0, %v2658
  %v2660 = vmul.f32 %v2639, %v2341
  %v2661 = vmul.f32 %v2620, %v2640
  %v2662 = vadd.f32 %v2660, %v2661
  %v2663 = vtanh.pop %v2662
  %v2664 = vmul.f32 %v2659, %v2663
  %s2665 = scalar_lea.vmem %s2, 56
  %2666 = vst [vmem:[%s2665] sm:$0xff] %v2664
  %2667 = vst [vmem:[#allocation3] sm:$0xff] %v2664
  %2668 = vst [vmem:[#allocation4] sm:$0xff] %v2662
  // Predicated region
  $region29: #{temporal_lstm_forward.1} parent=0 // pred_check
    _
  $region30: #{temporal_lstm_forward.1} parent=0 // pred_check_branch
    %2670 = sbr.rel (0) target = $region32
  $region31: #{temporal_lstm_forward.1} parent=0 // pred_region
    _
  $region32: #{temporal_lstm_forward.1} parent=0 // pred_fallthru
    _
  // Predicated region
  $region33: #{temporal_lstm_forward.1} parent=0 // pred_check
    _
  $region34: #{temporal_lstm_forward.1} parent=0 // pred_check_branch
    %2672 = sbr.rel (0) target = $region36
  $region35: #{temporal_lstm_forward.1} parent=0 // pred_region
    _
  $region36: #{temporal_lstm_forward.1} parent=0 // pred_fallthru
    _
  %2673 = vsyncmov [#allocation5]
  %s2674 = vpop.sfrf %2673
  %p2675 = scmp.eq.s32.totalorder %s2674, 0
  %p2676 = pneg %p2675
  %2678 = shalt.err (%p2676)

</llo_original>
